<compile_context>
chip_gen: v7x
topology: tpu7x:2x2x1
jax: 0.10.0
libtpu: 0.0.40
codegen_flags: <defaults>
</compile_context>

<pallas_src>
import functools

import jax
import jax.numpy as jnp
from jax.experimental import pallas as pl
from jax.experimental.pallas import tpu as pltpu


def _round_up(x, m):
    return (x + m - 1) // m * m


def _conv3d_bn_lrelu_kernel(x_ref, w_ref, scale_ref, bias_ref, o_ref,
                            acc_ref, patch_ref, *, slope):
    # x_ref:     (1, 1, H+2, W+2, Cin)   bf16  padded input plane at depth d + kd
    # w_ref:     (1, 9*Cin, Cout_pad)    bf16  weights of depth-tap kd, (kh,kw,ci) folded into K
    # scale_ref: (1, Cout_pad)           f32   folded BN scale  = gamma / sqrt(var + eps)
    # bias_ref:  (1, Cout_pad)           f32   folded BN bias   = beta - mean * scale
    # o_ref:     (1, 1, H, W, Cout_pad)  f32   output block (resident across kd)
    # acc_ref:   (H*W, Cout_pad)         f32   accumulator scratch
    # patch_ref: (H*W, 9*Cin)            bf16  im2col patch scratch
    kd = pl.program_id(2)

    H = o_ref.shape[2]
    W = o_ref.shape[3]
    Cin = x_ref.shape[4]
    Cout_pad = o_ref.shape[4]

    @pl.when(kd == 0)
    def _init():
        acc_ref[...] = jnp.zeros_like(acc_ref)

    # Build the (H*W, 9*Cin) patch for this depth tap: K-order is (kh, kw, ci),
    # matching the weight layout produced in the wrapper.
    xs = x_ref[0, 0]                                   # (H+2, W+2, Cin) bf16
    for kh in range(3):
        for kw in range(3):
            k = kh * 3 + kw
            patch_ref[:, k * Cin:(k + 1) * Cin] = (
                xs[kh:kh + H, kw:kw + W, :].reshape(H * W, Cin))

    # Single MXU matmul per grid step: (H*W, 9*Cin) x (9*Cin, Cout_pad), f32 accumulation.
    acc_ref[...] += jnp.dot(patch_ref[...], w_ref[0],
                            preferred_element_type=jnp.float32)

    @pl.when(kd == pl.num_programs(2) - 1)
    def _finalize():
        # Fused inference-mode BatchNorm + LeakyReLU(slope).
        y = acc_ref[...] * scale_ref[0] + bias_ref[0]
        y = jnp.where(y >= 0, y, slope * y)
        o_ref[...] = y.reshape(1, 1, H, W, Cout_pad).astype(o_ref.dtype)


def conv_bn_relu_3d(x_ncdhw, w_oidhw, gamma, beta, running_mean, running_var,
                    eps=1e-5, slope=0.01):
    """Conv3d(3x3x3, stride=1, pad=1, bias=False) + BN (running stats) + LeakyReLU.

    x_ncdhw : (B, Cin, D, H, W) float32
    w_oidhw : (Cout, Cin, 3, 3, 3)
    gamma/beta/running_mean/running_var : (Cout,)
    returns : (B, Cout, D, H, W)
    """
    B, Cin, D, H, W = x_ncdhw.shape
    Cout = w_oidhw.shape[0]
    Cout_pad = _round_up(Cout, 128)

    # --- glue: layout, padding, BN folding, bf16 casts (plain JAX) ---
    x = jnp.transpose(x_ncdhw, (0, 2, 3, 4, 1))                      # NDHWC
    x = jnp.pad(x, ((0, 0), (1, 1), (1, 1), (1, 1), (0, 0)))          # pad D/H/W by 1
    x = x.astype(jnp.bfloat16)

    # (Cout, Cin, kd, kh, kw) -> (kd, kh, kw, Cin, Cout) -> (kd, 9*Cin, Cout_pad)
    w = jnp.transpose(w_oidhw, (2, 3, 4, 1, 0)).reshape(3, 9 * Cin, Cout)
    w = jnp.pad(w, ((0, 0), (0, 0), (0, Cout_pad - Cout))).astype(jnp.bfloat16)

    scale = gamma / jnp.sqrt(running_var + eps)
    bias = beta - running_mean * scale
    scale = jnp.pad(scale, (0, Cout_pad - Cout)).reshape(1, Cout_pad).astype(jnp.float32)
    bias = jnp.pad(bias, (0, Cout_pad - Cout)).reshape(1, Cout_pad).astype(jnp.float32)

    kernel = functools.partial(_conv3d_bn_lrelu_kernel, slope=slope)

    flops = 2 * B * D * H * W * 27 * Cin * Cout
    bytes_accessed = (3 * x.size * 2            # each padded plane read once per kd
                      + w.size * 2
                      + B * D * H * W * Cout_pad * 4)

    out = pl.pallas_call(
        kernel,
        out_shape=jax.ShapeDtypeStruct((B, D, H, W, Cout_pad), jnp.float32),
        grid=(B, D, 3),
        in_specs=[
            pl.BlockSpec((1, 1, H + 2, W + 2, Cin),
                         lambda b, d, kd: (b, d + kd, 0, 0, 0)),
            pl.BlockSpec((1, 9 * Cin, Cout_pad), lambda b, d, kd: (kd, 0, 0)),
            pl.BlockSpec((1, Cout_pad), lambda b, d, kd: (0, 0)),
            pl.BlockSpec((1, Cout_pad), lambda b, d, kd: (0, 0)),
        ],
        out_specs=pl.BlockSpec((1, 1, H, W, Cout_pad),
                               lambda b, d, kd: (b, d, 0, 0, 0)),
        scratch_shapes=[
            pltpu.VMEM((H * W, Cout_pad), jnp.float32),   # accumulator
            pltpu.VMEM((H * W, 9 * Cin), jnp.bfloat16),   # im2col patch
        ],
        compiler_params=pltpu.CompilerParams(
            dimension_semantics=("parallel", "parallel", "arbitrary"),
            vmem_limit_bytes=48 * 1024 * 1024),
        cost_estimate=pl.CostEstimate(flops=flops, transcendentals=0,
                                      bytes_accessed=bytes_accessed),
    )(x, w, scale, bias)

    out = out[..., :Cout]                                 # strip Cout padding
    return jnp.transpose(out, (0, 4, 1, 2, 3))            # back to NCDHW


def _reference(x, w, gamma, beta, running_mean, running_var, eps=1e-5, slope=0.01):
    y = jax.lax.conv_general_dilated(
        x, w, window_strides=(1, 1, 1),
        padding=((1, 1), (1, 1), (1, 1)),
        dimension_numbers=("NCDHW", "OIDHW", "NCDHW"))
    scale = (gamma / jnp.sqrt(running_var + eps)).reshape(1, -1, 1, 1, 1)
    bias = (beta - running_mean * gamma / jnp.sqrt(running_var + eps)).reshape(1, -1, 1, 1, 1)
    y = y * scale + bias
    return jnp.where(y >= 0, y, slope * y)


if __name__ == "__main__":
    # Small shapes consistent with the module: batch=2, Cin=4, Cout=8, D=8, H=W=16.
    B, Cin, Cout, D, H, W = 2, 4, 8, 8, 16, 16

    key = jax.random.PRNGKey(0)
    kx, kwt, kg, kb, km, kv = jax.random.split(key, 6)

    x = jax.random.normal(kx, (B, Cin, D, H, W), dtype=jnp.float32)
    w = jax.random.normal(kwt, (Cout, Cin, 3, 3, 3), dtype=jnp.float32) * 0.1
    gamma = jax.random.uniform(kg, (Cout,), minval=0.5, maxval=1.5)
    beta = jax.random.normal(kb, (Cout,)) * 0.1
    running_mean = jax.random.normal(km, (Cout,)) * 0.1
    running_var = jax.random.uniform(kv, (Cout,), minval=0.5, maxval=1.5)

    out = conv_bn_relu_3d(x, w, gamma, beta, running_mean, running_var)
    out = jax.block_until_ready(out)

    ref = _reference(x, w, gamma, beta, running_mean, running_var)
    assert out.shape == (B, Cout, D, H, W)
    # bf16 conv operands (f32 accumulation) -> loosened tolerance vs f32 reference.
    assert jnp.allclose(out, ref, atol=5e-2, rtol=5e-2), "mismatch vs reference"

    print("KERNEL_OK")
</pallas_src>

<mosaic_0001>
module attributes {stable_mosaic.version = 11 : i64} {
  func.func @_conv3d_bn_lrelu_kernel(%arg0: i32, %arg1: i32, %arg2: i32, %arg3: memref<1x1x18x18x4xbf16, #tpu.memory_space<vmem>>, %arg4: memref<1x36x128xbf16, #tpu.memory_space<vmem>>, %arg5: memref<1x128xf32, #tpu.memory_space<vmem>>, %arg6: memref<1x128xf32, #tpu.memory_space<vmem>>, %arg7: memref<1x1x16x16x128xf32, #tpu.memory_space<vmem>>, %arg8: memref<256x128xf32, #tpu.memory_space<vmem>>, %arg9: memref<256x36xbf16, #tpu.memory_space<vmem>>) attributes {dimension_semantics = [#tpu.dimension_semantics<parallel>, #tpu.dimension_semantics<parallel>, #tpu.dimension_semantics<arbitrary>], iteration_bounds = array<i64: 2, 8, 3>, scalar_prefetch = 0 : i64, scratch_operands = 2 : i64, tpu.core_type = #tpu.core_type<tc>, window_params = [{transform_indices = @transform_0, window_bounds = array<i64: 1, 1, 18, 18, 4>}, {transform_indices = @transform_1, window_bounds = array<i64: 1, 36, 128>}, {pipeline_mode = #tpu.pipeline_mode<synchronous>, transform_indices = @transform_2, window_bounds = array<i64: 1, 128>}, {pipeline_mode = #tpu.pipeline_mode<synchronous>, transform_indices = @transform_3, window_bounds = array<i64: 1, 128>}, {transform_indices = @transform_4, window_bounds = array<i64: 1, 1, 16, 16, 128>}]} {
    %c0_i32 = arith.constant 0 : i32
    %0 = arith.cmpi eq, %arg2, %c0_i32 : i32
    %1 = arith.extui %0 : i1 to i32
    %c0_i32_0 = arith.constant 0 : i32
    %2 = arith.cmpi ne, %1, %c0_i32_0 : i32
    scf.if %2 {
      %cst_25 = arith.constant 0.000000e+00 : f32
      %42 = vector.broadcast %cst_25 : f32 to vector<256x128xf32>
      %c0_26 = arith.constant 0 : index
      %c0_27 = arith.constant 0 : index
      %43 = vector.load %arg8[%c0_26, %c0_27] : memref<256x128xf32, #tpu.memory_space<vmem>>, vector<256x128xf32>
      tpu.vector_store %arg8[%c0_26, %c0_27], %42 {strides = array<i32>} : memref<256x128xf32, #tpu.memory_space<vmem>>, vector<256x128xf32>,
    } else {
    }
    %c0 = arith.constant 0 : index
    %c0_1 = arith.constant 0 : index
    %c0_2 = arith.constant 0 : index
    %c0_3 = arith.constant 0 : index
    %c0_4 = arith.constant 0 : index
    %3 = vector.load %arg3[%c0, %c0_1, %c0_2, %c0_3, %c0_4] : memref<1x1x18x18x4xbf16, #tpu.memory_space<vmem>>, vector<1x1x18x18x4xbf16>
    %4 = vector.shape_cast %3 : vector<1x1x18x18x4xbf16> to vector<18x18x4xbf16>
    %5 = vector.extract_strided_slice %4 {offsets = [0, 0, 0], sizes = [16, 16, 4], strides = [1, 1, 1]} : vector<18x18x4xbf16> to vector<16x16x4xbf16>
    %6 = vector.shape_cast %5 : vector<16x16x4xbf16> to vector<256x4xbf16>
    %c0_5 = arith.constant 0 : index
    %c0_6 = arith.constant 0 : index
    %7 = vector.load %arg9[%c0_5, %c0_6] : memref<256x36xbf16, #tpu.memory_space<vmem>>, vector<256x4xbf16>
    tpu.vector_store %arg9[%c0_5, %c0_6], %6 {strides = array<i32>} : memref<256x36xbf16, #tpu.memory_space<vmem>>, vector<256x4xbf16>,
    %8 = vector.extract_strided_slice %4 {offsets = [0, 1, 0], sizes = [16, 16, 4], strides = [1, 1, 1]} : vector<18x18x4xbf16> to vector<16x16x4xbf16>
    %9 = vector.shape_cast %8 : vector<16x16x4xbf16> to vector<256x4xbf16>
    %c0_7 = arith.constant 0 : index
    %c4 = arith.constant 4 : index
    %10 = vector.load %arg9[%c0_7, %c4] : memref<256x36xbf16, #tpu.memory_space<vmem>>, vector<256x4xbf16>
    tpu.vector_store %arg9[%c0_7, %c4], %9 {strides = array<i32>} : memref<256x36xbf16, #tpu.memory_space<vmem>>, vector<256x4xbf16>,
    %11 = vector.extract_strided_slice %4 {offsets = [0, 2, 0], sizes = [16, 16, 4], strides = [1, 1, 1]} : vector<18x18x4xbf16> to vector<16x16x4xbf16>
    %12 = vector.shape_cast %11 : vector<16x16x4xbf16> to vector<256x4xbf16>
    %c0_8 = arith.constant 0 : index
    %c8 = arith.constant 8 : index
    %13 = vector.load %arg9[%c0_8, %c8] : memref<256x36xbf16, #tpu.memory_space<vmem>>, vector<256x4xbf16>
    tpu.vector_store %arg9[%c0_8, %c8], %12 {strides = array<i32>} : memref<256x36xbf16, #tpu.memory_space<vmem>>, vector<256x4xbf16>,
    %14 = vector.extract_strided_slice %4 {offsets = [1, 0, 0], sizes = [16, 16, 4], strides = [1, 1, 1]} : vector<18x18x4xbf16> to vector<16x16x4xbf16>
    %15 = vector.shape_cast %14 : vector<16x16x4xbf16> to vector<256x4xbf16>
    %c0_9 = arith.constant 0 : index
    %c12 = arith.constant 12 : index
    %16 = vector.load %arg9[%c0_9, %c12] : memref<256x36xbf16, #tpu.memory_space<vmem>>, vector<256x4xbf16>
    tpu.vector_store %arg9[%c0_9, %c12], %15 {strides = array<i32>} : memref<256x36xbf16, #tpu.memory_space<vmem>>, vector<256x4xbf16>,
    %17 = vector.extract_strided_slice %4 {offsets = [1, 1, 0], sizes = [16, 16, 4], strides = [1, 1, 1]} : vector<18x18x4xbf16> to vector<16x16x4xbf16>
    %18 = vector.shape_cast %17 : vector<16x16x4xbf16> to vector<256x4xbf16>
    %c0_10 = arith.constant 0 : index
    %c16 = arith.constant 16 : index
    %19 = vector.load %arg9[%c0_10, %c16] : memref<256x36xbf16, #tpu.memory_space<vmem>>, vector<256x4xbf16>
    tpu.vector_store %arg9[%c0_10, %c16], %18 {strides = array<i32>} : memref<256x36xbf16, #tpu.memory_space<vmem>>, vector<256x4xbf16>,
    %20 = vector.extract_strided_slice %4 {offsets = [1, 2, 0], sizes = [16, 16, 4], strides = [1, 1, 1]} : vector<18x18x4xbf16> to vector<16x16x4xbf16>
    %21 = vector.shape_cast %20 : vector<16x16x4xbf16> to vector<256x4xbf16>
    %c0_11 = arith.constant 0 : index
    %c20 = arith.constant 20 : index
    %22 = vector.load %arg9[%c0_11, %c20] : memref<256x36xbf16, #tpu.memory_space<vmem>>, vector<256x4xbf16>
    tpu.vector_store %arg9[%c0_11, %c20], %21 {strides = array<i32>} : memref<256x36xbf16, #tpu.memory_space<vmem>>, vector<256x4xbf16>,
    %23 = vector.extract_strided_slice %4 {offsets = [2, 0, 0], sizes = [16, 16, 4], strides = [1, 1, 1]} : vector<18x18x4xbf16> to vector<16x16x4xbf16>
    %24 = vector.shape_cast %23 : vector<16x16x4xbf16> to vector<256x4xbf16>
    %c0_12 = arith.constant 0 : index
    %c24 = arith.constant 24 : index
    %25 = vector.load %arg9[%c0_12, %c24] : memref<256x36xbf16, #tpu.memory_space<vmem>>, vector<256x4xbf16>
    tpu.vector_store %arg9[%c0_12, %c24], %24 {strides = array<i32>} : memref<256x36xbf16, #tpu.memory_space<vmem>>, vector<256x4xbf16>,
    %26 = vector.extract_strided_slice %4 {offsets = [2, 1, 0], sizes = [16, 16, 4], strides = [1, 1, 1]} : vector<18x18x4xbf16> to vector<16x16x4xbf16>
    %27 = vector.shape_cast %26 : vector<16x16x4xbf16> to vector<256x4xbf16>
    %c0_13 = arith.constant 0 : index
    %c28 = arith.constant 28 : index
    %28 = vector.load %arg9[%c0_13, %c28] : memref<256x36xbf16, #tpu.memory_space<vmem>>, vector<256x4xbf16>
    tpu.vector_store %arg9[%c0_13, %c28], %27 {strides = array<i32>} : memref<256x36xbf16, #tpu.memory_space<vmem>>, vector<256x4xbf16>,
    %29 = vector.extract_strided_slice %4 {offsets = [2, 2, 0], sizes = [16, 16, 4], strides = [1, 1, 1]} : vector<18x18x4xbf16> to vector<16x16x4xbf16>
    %30 = vector.shape_cast %29 : vector<16x16x4xbf16> to vector<256x4xbf16>
    %c0_14 = arith.constant 0 : index
    %c32 = arith.constant 32 : index
    %31 = vector.load %arg9[%c0_14, %c32] : memref<256x36xbf16, #tpu.memory_space<vmem>>, vector<256x4xbf16>
    tpu.vector_store %arg9[%c0_14, %c32], %30 {strides = array<i32>} : memref<256x36xbf16, #tpu.memory_space<vmem>>, vector<256x4xbf16>,
    %c0_15 = arith.constant 0 : index
    %c0_16 = arith.constant 0 : index
    %32 = vector.load %arg8[%c0_15, %c0_16] : memref<256x128xf32, #tpu.memory_space<vmem>>, vector<256x128xf32>
    %c0_17 = arith.constant 0 : index
    %c0_18 = arith.constant 0 : index
    %33 = vector.load %arg9[%c0_17, %c0_18] : memref<256x36xbf16, #tpu.memory_space<vmem>>, vector<256x36xbf16>
    %c0_19 = arith.constant 0 : index
    %c0_20 = arith.constant 0 : index
    %c0_21 = arith.constant 0 : index
    %34 = vector.load %arg4[%c0_19, %c0_20, %c0_21] : memref<1x36x128xbf16, #tpu.memory_space<vmem>>, vector<1x36x128xbf16>
    %35 = vector.shape_cast %34 : vector<1x36x128xbf16> to vector<36x128xbf16>
    %cst = arith.constant dense<0.000000e+00> : vector<256x128xf32>
    %36 = tpu.matmul %33, %35, %cst {dimension_numbers = #tpu.dot_dimension_numbers<[1], [0], [0], [1], [0, 0, 1, 1], [], []>} : vector<256x36xbf16>, vector<36x128xbf16>, vector<256x128xf32> -> vector<256x128xf32>
    %37 = arith.addf %32, %36 : vector<256x128xf32>
    %c0_22 = arith.constant 0 : index
    %c0_23 = arith.constant 0 : index
    %38 = vector.load %arg8[%c0_22, %c0_23] : memref<256x128xf32, #tpu.memory_space<vmem>>, vector<256x128xf32>
    tpu.vector_store %arg8[%c0_22, %c0_23], %37 {strides = array<i32>} : memref<256x128xf32, #tpu.memory_space<vmem>>, vector<256x128xf32>,
    %c2_i32 = arith.constant 2 : i32
    %39 = arith.cmpi eq, %arg2, %c2_i32 : i32
    %40 = arith.extui %39 : i1 to i32
    %c0_i32_24 = arith.constant 0 : i32
    %41 = arith.cmpi ne, %40, %c0_i32_24 : i32
    scf.if %41 {
      %c0_25 = arith.constant 0 : index
      %c0_26 = arith.constant 0 : index
      %42 = vector.load %arg8[%c0_25, %c0_26] : memref<256x128xf32, #tpu.memory_space<vmem>>, vector<256x128xf32>
      %c0_27 = arith.constant 0 : index
      %c0_28 = arith.constant 0 : index
      %43 = vector.load %arg5[%c0_27, %c0_28] : memref<1x128xf32, #tpu.memory_space<vmem>>, vector<1x128xf32>
      %44 = vector.shape_cast %43 : vector<1x128xf32> to vector<128xf32>
      %45 = vector.shape_cast %44 : vector<128xf32> to vector<1x128xf32>
      %46 = vector.broadcast %45 : vector<1x128xf32> to vector<256x128xf32>
      %47 = arith.mulf %42, %46 : vector<256x128xf32>
      %c0_29 = arith.constant 0 : index
      %c0_30 = arith.constant 0 : index
      %48 = vector.load %arg6[%c0_29, %c0_30] : memref<1x128xf32, #tpu.memory_space<vmem>>, vector<1x128xf32>
      %49 = vector.shape_cast %48 : vector<1x128xf32> to vector<128xf32>
      %50 = vector.shape_cast %49 : vector<128xf32> to vector<1x128xf32>
      %51 = vector.broadcast %50 : vector<1x128xf32> to vector<256x128xf32>
      %52 = arith.addf %47, %51 : vector<256x128xf32>
      %cst_31 = arith.constant 0.000000e+00 : f32
      %53 = vector.broadcast %cst_31 : f32 to vector<256x128xf32>
      %54 = arith.cmpf oge, %52, %53 : vector<256x128xf32>
      %cst_32 = arith.constant 0.00999999977 : f32
      %55 = vector.broadcast %cst_32 : f32 to vector<256x128xf32>
      %56 = arith.mulf %55, %52 : vector<256x128xf32>
      %57 = arith.select %54, %52, %56 : vector<256x128xi1>, vector<256x128xf32>
      %58 = vector.shape_cast %57 : vector<256x128xf32> to vector<1x1x16x16x128xf32>
      %c0_33 = arith.constant 0 : index
      %c0_34 = arith.constant 0 : index
      %c0_35 = arith.constant 0 : index
      %c0_36 = arith.constant 0 : index
      %c0_37 = arith.constant 0 : index
      %59 = vector.load %arg7[%c0_33, %c0_34, %c0_35, %c0_36, %c0_37] : memref<1x1x16x16x128xf32, #tpu.memory_space<vmem>>, vector<1x1x16x16x128xf32>
      tpu.vector_store %arg7[%c0_33, %c0_34, %c0_35, %c0_36, %c0_37], %58 {strides = array<i32>} : memref<1x1x16x16x128xf32, #tpu.memory_space<vmem>>, vector<1x1x16x16x128xf32>,
    } else {
    }
    return
  }
  func.func @transform_0(%arg0: i32, %arg1: i32, %arg2: i32) -> (i32, i32, i32, i32, i32) {
    %0 = arith.addi %arg1, %arg2 : i32
    %c0_i32 = arith.constant 0 : i32
    %c0_i32_0 = arith.constant 0 : i32
    %c0_i32_1 = arith.constant 0 : i32
    %c0_i32_2 = arith.constant 0 : i32
    return %arg0, %0, %c0_i32, %c0_i32_0, %c0_i32_1 : i32, i32, i32, i32, i32
  }
  func.func @transform_1(%arg0: i32, %arg1: i32, %arg2: i32) -> (i32, i32, i32) {
    %c0_i32 = arith.constant 0 : i32
    %c0_i32_0 = arith.constant 0 : i32
    %c0_i32_1 = arith.constant 0 : i32
    return %arg2, %c0_i32, %c0_i32_0 : i32, i32, i32
  }
  func.func @transform_2(%arg0: i32, %arg1: i32, %arg2: i32) -> (i32, i32) {
    %c0_i32 = arith.constant 0 : i32
    %c0_i32_0 = arith.constant 0 : i32
    %c0_i32_1 = arith.constant 0 : i32
    return %c0_i32, %c0_i32_0 : i32, i32
  }
  func.func @transform_3(%arg0: i32, %arg1: i32, %arg2: i32) -> (i32, i32) {
    %c0_i32 = arith.constant 0 : i32
    %c0_i32_0 = arith.constant 0 : i32
    %c0_i32_1 = arith.constant 0 : i32
    return %c0_i32, %c0_i32_0 : i32, i32
  }
  func.func @transform_4(%arg0: i32, %arg1: i32, %arg2: i32) -> (i32, i32, i32, i32, i32) {
    %c0_i32 = arith.constant 0 : i32
    %c0_i32_0 = arith.constant 0 : i32
    %c0_i32_1 = arith.constant 0 : i32
    %c0_i32_2 = arith.constant 0 : i32
    return %arg0, %arg1, %c0_i32, %c0_i32_0, %c0_i32_1 : i32, i32, i32, i32, i32
  }
}

</mosaic_0001>

<llo_original>
// kernel: tpu_custom_call.1
$region0: #{tpu_custom_call.1}
  #allocation0 [shape = 'u32[]', space=smem, size = 0x4, offset = 0x4, fixed_abs, tag = 'smem constant byte address 0x4 - core index']
  #allocation1 [shape = 'u32[144,128]{1,0:T(1,128)}', space=vmem, size = 0x12000, scoped, tag = 'internal scratch']
  #allocation2 [shape = 'f32[256,128]{1,0:T(8,128)}', space=vmem, size = 0x20000, scoped, tag = 'scratch operand']
  #allocation3 [shape = 'bf16[256,36]{1,0:T(16,128)(2,1)}', space=vmem, size = 0x10000, scoped, tag = 'scratch operand']
  %s0 = inlined_call_operand.vmem [shape: bf16[2,10,18,18,4], index: 0, kind: input, shape index: {}]
  %s1 = inlined_call_operand.vmem [shape: bf16[3,36,128], index: 1, kind: input, shape index: {}]
  %s2 = inlined_call_operand.vmem [shape: f32[1,128], index: 2, kind: input, shape index: {}]
  %s3 = inlined_call_operand.vmem [shape: f32[1,128], index: 3, kind: input, shape index: {}]
  %s4 = inlined_call_operand.hbm [shape: f32[2,8,16,16,128], index: 4, kind: output, shape index: {}]
  %s5 = sld [smem:[#allocation0]]
  $region57: #{tpu_custom_call.1} parent=0
    _
  %s7 = ssub.s32 1, %s5
  %s8 = scalar_select 0, %s7, %s5
  $region1: #{tpu_custom_call.1} parent=0
    #allocation4 [shape = 'u8[262144]{0}', space=vmem, size = 0x40000, scoped, tag = 'output window, operand 0']
    #allocation5 [shape = 's32[2]{0}', space=sflag, size = 0x8, scoped, tag = 'scoped memory for tpu_custom_call.1']
    %9 = vsyncpa [#allocation5], 0
    %s10 = scalar_lea.sflag [#allocation5], 1
    %11 = vsyncpa %s10, 0
    loop: start=0, step=1, limit=50
    $region2: #{tpu_custom_call.1} parent=1 // loop_pre_header
      _
    $region3: #{tpu_custom_call.1} parent=1 // loop_header
      %s13 = sphi 0, %s17
      %p14 = scmp.ge.s32.totalorder %s13, 50
      %s20 = sphi 0, %s39
      %s21 = sphi 0, %s35
      %s22 = sphi 0, %s31
      %s23 = sphi 0, %s20
      %s24 = sphi 0, %s21
      %s25 = sphi 0, %s22
      %s26 = sphi 0, %s23
      %s27 = sphi 0, %s24
      %s28 = sphi 0, %s25
      %s46 = sphi 0, %s48
      %s49 = sphi 0, %s46
      %s50 = sphi 0, %s49
      %s66 = sphi 0, %s50
      %s72 = sphi 0, %s74
      %s75 = sphi 0, %s72
      %s76 = sphi 0, %s75
      %s92 = sphi 0, %s76
      %s96 = sphi 0, %s96
      %s98 = sphi 0, %s96
      %s99 = sphi 0, %s98
      %s113 = sphi 0, %s99
      %s117 = sphi 0, %s117
      %s119 = sphi 0, %s117
      %s120 = sphi 0, %s119
      %s134 = sphi 0, %s120
      %s142 = sphi 0, %s144
      %s145 = sphi 0, %s142
      %s146 = sphi 0, %s145
      %s162 = sphi 0, %s146
    $region4: #{tpu_custom_call.1} parent=1 // loop_header_branch
      %16 = sbr.rel (%p14) target = $region8
    $region5: #{tpu_custom_call.1} parent=1 // loop_body
      %s18 = ssub.s32 %s13, 1
      %s19 = ssub.s32 %s13, 2
      %s29 = sadd.s32 1, %s22
      %p30 = scmp.ge.s32.totalorder %s29, 3
      %s31 = scalar_select %p30, 0, %s29
      %s32 = sadd.s32 1, %s21
      %s33 = scalar_select %p30, %s32, %s21
      %p34 = scmp.ge.s32.totalorder %s33, 8
      %s35 = scalar_select %p34, 0, %s33
      %s36 = sadd.s32 1, %s20
      %s37 = scalar_select %p34, %s36, %s20
      %p38 = scmp.ge.s32.totalorder %s37, 2
      %s39 = scalar_select %p38, 0, %s37
      %s40 = sadd.s32 %s21, %s22
      %s41 = sadd.s32 %s35, %s31
      %s42 = ssub.s32 %s20, %s39
      %s43 = ssub.s32 %s40, %s41
      %s44 = sor.u32 %s42, %s43
      %p45 = scmp.eq.s32.totalorder %s44, 0
      %s47 = sadd.s32 %s46, 1
      %s48 = scalar_select %p45, %s46, %s47
      %p51 = pneg %p45
      %p52 = scmp.eq.s32.totalorder %s13, 47
      %p53 = por %p51, %p52
      %p54 = scmp.ne.s32.totalorder %s46, %s49
      %p55 = scmp.eq.s32.totalorder %s13, 0
      %p56 = por %p54, %p55
      %p57 = scmp.ne.s32.totalorder %s46, %s49
      %p58 = scmp.eq.s32.totalorder %s18, 47
      %p59 = por %p57, %p58
      %p60 = scmp.ne.s32.totalorder %s49, %s50
      %p61 = scmp.eq.s32.totalorder %s18, 0
      %p62 = por %p60, %p61
      %p63 = scmp.ne.s32.totalorder %s49, %s50
      %p64 = scmp.eq.s32.totalorder %s19, 47
      %p65 = por %p63, %p64
      %p67 = scmp.ne.s32.totalorder %s50, %s66
      %p68 = scmp.eq.s32.totalorder %s19, 0
      %p69 = por %p67, %p68
      %s70 = ssub.s32 %s22, %s31
      %p71 = scmp.eq.s32.totalorder %s70, 0
      %s73 = sadd.s32 %s72, 1
      %s74 = scalar_select %p71, %s72, %s73
      %p77 = pneg %p71
      %p78 = scmp.eq.s32.totalorder %s13, 47
      %p79 = por %p77, %p78
      %p80 = scmp.ne.s32.totalorder %s72, %s75
      %p81 = scmp.eq.s32.totalorder %s13, 0
      %p82 = por %p80, %p81
      %p83 = scmp.ne.s32.totalorder %s72, %s75
      %p84 = scmp.eq.s32.totalorder %s18, 47
      %p85 = por %p83, %p84
      %p86 = scmp.ne.s32.totalorder %s75, %s76
      %p87 = scmp.eq.s32.totalorder %s18, 0
      %p88 = por %p86, %p87
      %p89 = scmp.ne.s32.totalorder %s75, %s76
      %p90 = scmp.eq.s32.totalorder %s19, 47
      %p91 = por %p89, %p90
      %p93 = scmp.ne.s32.totalorder %s76, %s92
      %p94 = scmp.eq.s32.totalorder %s19, 0
      %p95 = por %p93, %p94
      %s97 = sadd.s32 %s96, 1
      %p100 = scmp.eq.s32.totalorder %s13, 47
      %p101 = scmp.ne.s32.totalorder %s96, %s98
      %p102 = scmp.eq.s32.totalorder %s13, 0
      %p103 = por %p101, %p102
      %p104 = scmp.ne.s32.totalorder %s96, %s98
      %p105 = scmp.eq.s32.totalorder %s18, 47
      %p106 = por %p104, %p105
      %p107 = scmp.ne.s32.totalorder %s98, %s99
      %p108 = scmp.eq.s32.totalorder %s18, 0
      %p109 = por %p107, %p108
      %p110 = scmp.ne.s32.totalorder %s98, %s99
      %p111 = scmp.eq.s32.totalorder %s19, 47
      %p112 = por %p110, %p111
      %p114 = scmp.ne.s32.totalorder %s99, %s113
      %p115 = scmp.eq.s32.totalorder %s19, 0
      %p116 = por %p114, %p115
      %s118 = sadd.s32 %s117, 1
      %p121 = scmp.eq.s32.totalorder %s13, 47
      %p122 = scmp.ne.s32.totalorder %s117, %s119
      %p123 = scmp.eq.s32.totalorder %s13, 0
      %p124 = por %p122, %p123
      %p125 = scmp.ne.s32.totalorder %s117, %s119
      %p126 = scmp.eq.s32.totalorder %s18, 47
      %p127 = por %p125, %p126
      %p128 = scmp.ne.s32.totalorder %s119, %s120
      %p129 = scmp.eq.s32.totalorder %s18, 0
      %p130 = por %p128, %p129
      %p131 = scmp.ne.s32.totalorder %s119, %s120
      %p132 = scmp.eq.s32.totalorder %s19, 47
      %p133 = por %p131, %p132
      %p135 = scmp.ne.s32.totalorder %s120, %s134
      %p136 = scmp.eq.s32.totalorder %s19, 0
      %p137 = por %p135, %p136
      %s138 = ssub.s32 %s20, %s39
      %s139 = ssub.s32 %s21, %s35
      %s140 = sor.u32 %s138, %s139
      %p141 = scmp.eq.s32.totalorder %s140, 0
      %s143 = sadd.s32 %s142, 1
      %s144 = scalar_select %p141, %s142, %s143
      %p147 = pneg %p141
      %p148 = scmp.eq.s32.totalorder %s13, 47
      %p149 = por %p147, %p148
      %p150 = scmp.ne.s32.totalorder %s142, %s145
      %p151 = scmp.eq.s32.totalorder %s13, 0
      %p152 = por %p150, %p151
      %p153 = scmp.ne.s32.totalorder %s142, %s145
      %p154 = scmp.eq.s32.totalorder %s18, 47
      %p155 = por %p153, %p154
      %p156 = scmp.ne.s32.totalorder %s145, %s146
      %p157 = scmp.eq.s32.totalorder %s18, 0
      %p158 = por %p156, %p157
      %p159 = scmp.ne.s32.totalorder %s145, %s146
      %p160 = scmp.eq.s32.totalorder %s19, 47
      %p161 = por %p159, %p160
      %p163 = scmp.ne.s32.totalorder %s146, %s162
      %p164 = scmp.eq.s32.totalorder %s19, 0
      %p165 = por %p163, %p164
      %p166 = scmp.le.s32.totalorder 1, %s13
      %p167 = scmp.lt.s32.totalorder %s13, 49
      %p168 = pnand %p166, %p167
      %p169 = pneg %p168
      // Predicated region
      $region9: #{tpu_custom_call.1} parent=5 // pred_check
        _
      $region10: #{tpu_custom_call.1} parent=5 // pred_check_branch
        %171 = sbr.rel (%p168) target = $region12
      $region11: #{tpu_custom_call.1} parent=5 // pred_region
        %s172 = ssub.s32 %s13, 1
        // Predicated region
        $region13: #{tpu_custom_call.1} parent=11 // pred_check
          %p173 = pneg %p109
        $region14: #{tpu_custom_call.1} parent=11 // pred_check_branch
          %175 = sbr.rel (%p173) target = $region16
        $region15: #{tpu_custom_call.1} parent=11 // pred_region
          _
        $region16: #{tpu_custom_call.1} parent=11 // pred_fallthru
          _
        // Predicated region
        $region17: #{tpu_custom_call.1} parent=11 // pred_check
          %p176 = pneg %p130
        $region18: #{tpu_custom_call.1} parent=11 // pred_check_branch
          %178 = sbr.rel (%p176) target = $region20
        $region19: #{tpu_custom_call.1} parent=11 // pred_region
          _
        $region20: #{tpu_custom_call.1} parent=11 // pred_fallthru
          _
      $region12: #{tpu_custom_call.1} parent=5 // pred_fallthru
        _
      %p179 = scmp.lt.s32.totalorder %s13, 48
      // Predicated region
      $region21: #{tpu_custom_call.1} parent=5 // pred_check
        %p180 = pneg %p179
      $region22: #{tpu_custom_call.1} parent=5 // pred_check_branch
        %182 = sbr.rel (%p180) target = $region24
      $region23: #{tpu_custom_call.1} parent=5 // pred_region
        // Predicated region
        $region25: #{tpu_custom_call.1} parent=23 // pred_check
          %p183 = pneg %p56
        $region26: #{tpu_custom_call.1} parent=23 // pred_check_branch
          %185 = sbr.rel (%p183) target = $region28
        $region27: #{tpu_custom_call.1} parent=23 // pred_region
          %s186 = sadd.s32 %s21, %s22
          %p187 = scmp.lt.s32.totalorder %s20, 1
          %s188 = scalar_select %p187, %s20, 1
          %p189 = scmp.lt.s32.totalorder %s186, 9
          %s190 = scalar_select %p189, %s186, 9
          %s191 = smul.addr %s190, 54
          %s192 = smul.addr %s188, 540
          %s193 = sadd.s32 %s191, %s192
          %s194 = smul.addr %s193, 4
          %s195 = scalar_lea.vmem %s0, %s194
          %s196 = sadd.s32 %s21, %s22
        $region28: #{tpu_custom_call.1} parent=23 // pred_fallthru
          _
        // Predicated region
        $region29: #{tpu_custom_call.1} parent=23 // pred_check
          %p197 = pneg %p82
        $region30: #{tpu_custom_call.1} parent=23 // pred_check_branch
          %199 = sbr.rel (%p197) target = $region32
        $region31: #{tpu_custom_call.1} parent=23 // pred_region
          %p200 = scmp.lt.s32.totalorder %s22, 2
          %s201 = scalar_select %p200, %s22, 2
          %s202 = smul.addr %s201, 5
          %s203 = smul.addr %s202, 4
          %s204 = scalar_lea.vmem %s1, %s203
        $region32: #{tpu_custom_call.1} parent=23 // pred_fallthru
          _
      $region24: #{tpu_custom_call.1} parent=5 // pred_fallthru
        _
      %p205 = scmp.le.s32.totalorder 1, %s13
      %p206 = scmp.lt.s32.totalorder %s13, 49
      %p207 = pnand %p205, %p206
      %p208 = pneg %p207
      // Predicated region
      $region33: #{tpu_custom_call.1} parent=5 // pred_check
        _
      $region34: #{tpu_custom_call.1} parent=5 // pred_check_branch
        %210 = sbr.rel (%p207) target = $region36
      $region35: #{tpu_custom_call.1} parent=5 // pred_region
        %s211 = ssub.s32 %s13, 1
        %s212 = sadd.s32 %s24, %s25
        %p213 = scmp.lt.s32.totalorder %s23, 1
        %s214 = scalar_select %p213, %s23, 1
        %p215 = scmp.lt.s32.totalorder %s212, 9
        %s216 = scalar_select %p215, %s212, 9
        %s217 = smul.addr %s216, 54
        %s218 = smul.addr %s214, 540
        %s219 = sadd.s32 %s217, %s218
        %s220 = smul.addr %s219, 4
        %s221 = scalar_lea.vmem %s0, %s220
        %p222 = pneg %p62
        %p223 = pneg %p59
        %p224 = scmp.lt.s32.totalorder %s25, 2
        %s225 = scalar_select %p224, %s25, 2
        %s226 = smul.addr %s225, 5
        %s227 = smul.addr %s226, 4
        %s228 = scalar_lea.vmem %s1, %s227
        %p229 = pneg %p88
        %p230 = pneg %p85
        %p231 = pneg %p109
        %p232 = pneg %p106
        %p233 = pneg %p130
        %p234 = pneg %p127
        %p235 = pneg %p158
        %p236 = pneg %p155
        %s237 = sand.u32 %s145, 1
        %s238 = scalar_lea.sflag [#allocation5], %s237
        %s239 = sand.u32 %s145, 1
        %s240 = smul.addr %s239, 256
        %s241 = scalar_lea.vmem [#allocation4], %s240
        %s242 = sadd.s32 %s24, %s25
        %p243 = scmp.lt.s32.totalorder %s23, 1
        %s244 = scalar_select %p243, %s23, 1
        %p245 = scmp.lt.s32.totalorder %s242, 9
        %s246 = scalar_select %p245, %s242, 9
        %s247 = smul.addr %s246, 54
        %s248 = smul.addr %s244, 540
        %s249 = sadd.s32 %s247, %s248
        %s250 = smul.addr %s249, 4
        %s251 = scalar_lea.vmem %s0, %s250
        %s252 = sadd.s32 %s24, %s25
        %p253 = scmp.lt.s32.totalorder %s25, 2
        %s254 = scalar_select %p253, %s25, 2
        %s255 = smul.addr %s254, 5
        %s256 = smul.addr %s255, 4
        %s257 = scalar_lea.vmem %s1, %s256
        %p259 = scmp.eq.s32.totalorder %s25, 0
        // Predicated region
        $region37: #{tpu_custom_call.1} parent=35 // pred_check
          %p260 = pneg %p259
        $region38: #{tpu_custom_call.1} parent=35 // pred_check_branch
          %262 = sbr.rel (%p260) target = $region40
        $region39: #{tpu_custom_call.1} parent=35 // pred_region
          %263 = vst [vmem:[#allocation2] sm:$0xff] 0.0
          %264 = vst [vmem:[#allocation2 + $0x8] sm:$0xff] 0.0
          %265 = vst [vmem:[#allocation2 + $0x10] sm:$0xff] 0.0
          %266 = vst [vmem:[#allocation2 + $0x18] sm:$0xff] 0.0
          %267 = vst [vmem:[#allocation2 + $0x20] sm:$0xff] 0.0
          %268 = vst [vmem:[#allocation2 + $0x28] sm:$0xff] 0.0
          %269 = vst [vmem:[#allocation2 + $0x30] sm:$0xff] 0.0
          %270 = vst [vmem:[#allocation2 + $0x38] sm:$0xff] 0.0
          %271 = vst [vmem:[#allocation2 + $0x40] sm:$0xff] 0.0
          %272 = vst [vmem:[#allocation2 + $0x48] sm:$0xff] 0.0
          %273 = vst [vmem:[#allocation2 + $0x50] sm:$0xff] 0.0
          %274 = vst [vmem:[#allocation2 + $0x58] sm:$0xff] 0.0
          %275 = vst [vmem:[#allocation2 + $0x60] sm:$0xff] 0.0
          %276 = vst [vmem:[#allocation2 + $0x68] sm:$0xff] 0.0
          %277 = vst [vmem:[#allocation2 + $0x70] sm:$0xff] 0.0
          %278 = vst [vmem:[#allocation2 + $0x78] sm:$0xff] 0.0
          %279 = vst [vmem:[#allocation2 + $0x80] sm:$0xff] 0.0
          %280 = vst [vmem:[#allocation2 + $0x88] sm:$0xff] 0.0
          %281 = vst [vmem:[#allocation2 + $0x90] sm:$0xff] 0.0
          %282 = vst [vmem:[#allocation2 + $0x98] sm:$0xff] 0.0
          %283 = vst [vmem:[#allocation2 + $0xa0] sm:$0xff] 0.0
          %284 = vst [vmem:[#allocation2 + $0xa8] sm:$0xff] 0.0
          %285 = vst [vmem:[#allocation2 + $0xb0] sm:$0xff] 0.0
          %286 = vst [vmem:[#allocation2 + $0xb8] sm:$0xff] 0.0
          %287 = vst [vmem:[#allocation2 + $0xc0] sm:$0xff] 0.0
          %288 = vst [vmem:[#allocation2 + $0xc8] sm:$0xff] 0.0
          %289 = vst [vmem:[#allocation2 + $0xd0] sm:$0xff] 0.0
          %290 = vst [vmem:[#allocation2 + $0xd8] sm:$0xff] 0.0
          %291 = vst [vmem:[#allocation2 + $0xe0] sm:$0xff] 0.0
          %292 = vst [vmem:[#allocation2 + $0xe8] sm:$0xff] 0.0
          %293 = vst [vmem:[#allocation2 + $0xf0] sm:$0xff] 0.0
          %294 = vst [vmem:[#allocation2 + $0xf8] sm:$0xff] 0.0
        $region40: #{tpu_custom_call.1} parent=35 // pred_fallthru
          _
        %v295 = vld [vmem:[%s251] sm:$0xf]
        %v296 = vld [vmem:[%s251 + $0x4] sm:$0xf]
        %v297 = vld [vmem:[%s251 + $0x8] sm:$0x1]
        %v298 = vld [vmem:[%s251 + $0xc] sm:$0xf]
        %v299 = vld [vmem:[%s251 + $0x10] sm:$0xf]
        %v300 = vld [vmem:[%s251 + $0x14] sm:$0x1]
        %v301 = vld [vmem:[%s251 + $0x18] sm:$0xf]
        %v302 = vld [vmem:[%s251 + $0x1c] sm:$0xf]
        %v303 = vld [vmem:[%s251 + $0x20] sm:$0x1]
        %v304 = vld [vmem:[%s251 + $0x24] sm:$0xf]
        %v305 = vld [vmem:[%s251 + $0x28] sm:$0xf]
        %v306 = vld [vmem:[%s251 + $0x2c] sm:$0x1]
        %v307 = vld [vmem:[%s251 + $0x30] sm:$0xf]
        %v308 = vld [vmem:[%s251 + $0x34] sm:$0xf]
        %v309 = vld [vmem:[%s251 + $0x38] sm:$0x1]
        %v310 = vld [vmem:[%s251 + $0x3c] sm:$0xf]
        %v311 = vld [vmem:[%s251 + $0x40] sm:$0xf]
        %v312 = vld [vmem:[%s251 + $0x44] sm:$0x1]
        %v313 = vld [vmem:[%s251 + $0x48] sm:$0xf]
        %v314 = vld [vmem:[%s251 + $0x4c] sm:$0xf]
        %v315 = vld [vmem:[%s251 + $0x50] sm:$0x1]
        %v316 = vld [vmem:[%s251 + $0x54] sm:$0xf]
        %v317 = vld [vmem:[%s251 + $0x58] sm:$0xf]
        %v318 = vld [vmem:[%s251 + $0x5c] sm:$0x1]
        %v319 = vld [vmem:[%s251 + $0x60] sm:$0xf]
        %v320 = vld [vmem:[%s251 + $0x64] sm:$0xf]
        %v321 = vld [vmem:[%s251 + $0x68] sm:$0x1]
        %v322 = vld [vmem:[%s251 + $0x6c] sm:$0xf]
        %v323 = vld [vmem:[%s251 + $0x70] sm:$0xf]
        %v324 = vld [vmem:[%s251 + $0x74] sm:$0x1]
        %v325 = vld [vmem:[%s251 + $0x78] sm:$0xf]
        %v326 = vld [vmem:[%s251 + $0x7c] sm:$0xf]
        %v327 = vld [vmem:[%s251 + $0x80] sm:$0x1]
        %v328 = vld [vmem:[%s251 + $0x84] sm:$0xf]
        %v329 = vld [vmem:[%s251 + $0x88] sm:$0xf]
        %v330 = vld [vmem:[%s251 + $0x8c] sm:$0x1]
        %v331 = vld [vmem:[%s251 + $0x90] sm:$0xf]
        %v332 = vld [vmem:[%s251 + $0x94] sm:$0xf]
        %v333 = vld [vmem:[%s251 + $0x98] sm:$0x1]
        %v334 = vld [vmem:[%s251 + $0x9c] sm:$0xf]
        %v335 = vld [vmem:[%s251 + $0xa0] sm:$0xf]
        %v336 = vld [vmem:[%s251 + $0xa4] sm:$0x1]
        %v337 = vld [vmem:[%s251 + $0xa8] sm:$0xf]
        %v338 = vld [vmem:[%s251 + $0xac] sm:$0xf]
        %v339 = vld [vmem:[%s251 + $0xb0] sm:$0x1]
        %v340 = vld [vmem:[%s251 + $0xb4] sm:$0xf]
        %v341 = vld [vmem:[%s251 + $0xb8] sm:$0xf]
        %v342 = vld [vmem:[%s251 + $0xbc] sm:$0x1]
        %v343 = vld [vmem:[%s251 + $0xc0] sm:$0xf]
        %v344 = vld [vmem:[%s251 + $0xc4] sm:$0xf]
        %v345 = vld [vmem:[%s251 + $0xc8] sm:$0x1]
        %v346 = vld [vmem:[%s251 + $0xcc] sm:$0xf]
        %v347 = vld [vmem:[%s251 + $0xd0] sm:$0xf]
        %v348 = vld [vmem:[%s251 + $0xd4] sm:$0x1]
        %v381 = vunpack.c.l.b16 %v295
        %v382 = vunpack.c.l.b16 %v296
        %v383 = vunpack.c.l.b16 %v298
        %v384 = vunpack.c.l.b16 %v299
        %v385 = vunpack.c.l.b16 %v301
        %v386 = vunpack.c.l.b16 %v302
        %v387 = vunpack.c.l.b16 %v304
        %v388 = vunpack.c.l.b16 %v305
        %v389 = vunpack.c.l.b16 %v307
        %v390 = vunpack.c.l.b16 %v308
        %v391 = vunpack.c.l.b16 %v310
        %v392 = vunpack.c.l.b16 %v311
        %v393 = vunpack.c.l.b16 %v313
        %v394 = vunpack.c.l.b16 %v314
        %v395 = vunpack.c.l.b16 %v316
        %v396 = vunpack.c.l.b16 %v317
        %v397 = vunpack.c.l.b16 %v319
        %v398 = vunpack.c.l.b16 %v320
        %v399 = vunpack.c.l.b16 %v322
        %v400 = vunpack.c.l.b16 %v323
        %v401 = vunpack.c.l.b16 %v325
        %v402 = vunpack.c.l.b16 %v326
        %v403 = vunpack.c.l.b16 %v328
        %v404 = vunpack.c.l.b16 %v329
        %v405 = vunpack.c.l.b16 %v331
        %v406 = vunpack.c.l.b16 %v332
        %v407 = vunpack.c.l.b16 %v334
        %v408 = vunpack.c.l.b16 %v335
        %v409 = vunpack.c.l.b16 %v337
        %v410 = vunpack.c.l.b16 %v338
        %v411 = vunpack.c.l.b16 %v340
        %v412 = vunpack.c.l.b16 %v341
        %v413 = vpack.c.b16 %v382, %v381
        %v414 = vpack.c.b16 %v384, %v383
        %v415 = vpack.c.b16 %v386, %v385
        %v416 = vpack.c.b16 %v388, %v387
        %v417 = vpack.c.b16 %v390, %v389
        %v418 = vpack.c.b16 %v392, %v391
        %v419 = vpack.c.b16 %v394, %v393
        %v420 = vpack.c.b16 %v396, %v395
        %v421 = vpack.c.b16 %v398, %v397
        %v422 = vpack.c.b16 %v400, %v399
        %v423 = vpack.c.b16 %v402, %v401
        %v424 = vpack.c.b16 %v404, %v403
        %v425 = vpack.c.b16 %v406, %v405
        %v426 = vpack.c.b16 %v408, %v407
        %v427 = vpack.c.b16 %v410, %v409
        %v428 = vpack.c.b16 %v412, %v411
        %vm445 = vcmask 31744
        %446 = vst.msk [vmem:[#allocation3] sm:$0xff] %vm445, %v413
        %447 = vst.msk [vmem:[#allocation3 + $0x8] sm:$0xff] %vm445, %v414
        %448 = vst.msk [vmem:[#allocation3 + $0x10] sm:$0xff] %vm445, %v415
        %449 = vst.msk [vmem:[#allocation3 + $0x18] sm:$0xff] %vm445, %v416
        %450 = vst.msk [vmem:[#allocation3 + $0x20] sm:$0xff] %vm445, %v417
        %451 = vst.msk [vmem:[#allocation3 + $0x28] sm:$0xff] %vm445, %v418
        %452 = vst.msk [vmem:[#allocation3 + $0x30] sm:$0xff] %vm445, %v419
        %453 = vst.msk [vmem:[#allocation3 + $0x38] sm:$0xff] %vm445, %v420
        %454 = vst.msk [vmem:[#allocation3 + $0x40] sm:$0xff] %vm445, %v421
        %455 = vst.msk [vmem:[#allocation3 + $0x48] sm:$0xff] %vm445, %v422
        %456 = vst.msk [vmem:[#allocation3 + $0x50] sm:$0xff] %vm445, %v423
        %457 = vst.msk [vmem:[#allocation3 + $0x58] sm:$0xff] %vm445, %v424
        %458 = vst.msk [vmem:[#allocation3 + $0x60] sm:$0xff] %vm445, %v425
        %459 = vst.msk [vmem:[#allocation3 + $0x68] sm:$0xff] %vm445, %v426
        %460 = vst.msk [vmem:[#allocation3 + $0x70] sm:$0xff] %vm445, %v427
        %461 = vst.msk [vmem:[#allocation3 + $0x78] sm:$0xff] %vm445, %v428
        %vm462 = vsmask.f32 3328
        %vm463 = vsmask.f32 7440
        %vm464 = vmor %vm462, %vm463
        %v466 = vshrl.u32 %v295, 16
        %v468 = vrot.slane %v466, 4
        %v469 = vshll.u32 %v295, 16
        %v471 = vrot.slane %v469, 5
        %v472 = vor.u32 %v468, %v471
        %v473 = vrot.slane %v472, 4
        %v475 = vshll.u32 %v296, 16
        %v477 = vrot.slane %v475, 5
        %v478 = vsel %vm464, %v473, %v477
        %v479 = vshrl.u32 %v296, 16
        %v481 = vrot.slane %v479, 4
        %v482 = vor.u32 %v481, %v477
        %v483 = vrot.slane %v482, 4
        %v485 = vshll.u32 %v297, 16
        %v487 = vrot.slane %v485, 5
        %v488 = vsel %vm464, %v483, %v487
        %v490 = vshrl.u32 %v298, 16
        %v492 = vrot.slane %v490, 4
        %v493 = vshll.u32 %v298, 16
        %v495 = vrot.slane %v493, 5
        %v496 = vor.u32 %v492, %v495
        %v497 = vrot.slane %v496, 4
        %v499 = vshll.u32 %v299, 16
        %v501 = vrot.slane %v499, 5
        %v502 = vsel %vm464, %v497, %v501
        %v503 = vshrl.u32 %v299, 16
        %v505 = vrot.slane %v503, 4
        %v506 = vor.u32 %v505, %v501
        %v507 = vrot.slane %v506, 4
        %v509 = vshll.u32 %v300, 16
        %v511 = vrot.slane %v509, 5
        %v512 = vsel %vm464, %v507, %v511
        %v514 = vshrl.u32 %v301, 16
        %v516 = vrot.slane %v514, 4
        %v517 = vshll.u32 %v301, 16
        %v519 = vrot.slane %v517, 5
        %v520 = vor.u32 %v516, %v519
        %v521 = vrot.slane %v520, 4
        %v523 = vshll.u32 %v302, 16
        %v525 = vrot.slane %v523, 5
        %v526 = vsel %vm464, %v521, %v525
        %v527 = vshrl.u32 %v302, 16
        %v529 = vrot.slane %v527, 4
        %v530 = vor.u32 %v529, %v525
        %v531 = vrot.slane %v530, 4
        %v533 = vshll.u32 %v303, 16
        %v535 = vrot.slane %v533, 5
        %v536 = vsel %vm464, %v531, %v535
        %v538 = vshrl.u32 %v304, 16
        %v540 = vrot.slane %v538, 4
        %v541 = vshll.u32 %v304, 16
        %v543 = vrot.slane %v541, 5
        %v544 = vor.u32 %v540, %v543
        %v545 = vrot.slane %v544, 4
        %v547 = vshll.u32 %v305, 16
        %v549 = vrot.slane %v547, 5
        %v550 = vsel %vm464, %v545, %v549
        %v551 = vshrl.u32 %v305, 16
        %v553 = vrot.slane %v551, 4
        %v554 = vor.u32 %v553, %v549
        %v555 = vrot.slane %v554, 4
        %v557 = vshll.u32 %v306, 16
        %v559 = vrot.slane %v557, 5
        %v560 = vsel %vm464, %v555, %v559
        %v562 = vshrl.u32 %v307, 16
        %v564 = vrot.slane %v562, 4
        %v565 = vshll.u32 %v307, 16
        %v567 = vrot.slane %v565, 5
        %v568 = vor.u32 %v564, %v567
        %v569 = vrot.slane %v568, 4
        %v571 = vshll.u32 %v308, 16
        %v573 = vrot.slane %v571, 5
        %v574 = vsel %vm464, %v569, %v573
        %v575 = vshrl.u32 %v308, 16
        %v577 = vrot.slane %v575, 4
        %v578 = vor.u32 %v577, %v573
        %v579 = vrot.slane %v578, 4
        %v581 = vshll.u32 %v309, 16
        %v583 = vrot.slane %v581, 5
        %v584 = vsel %vm464, %v579, %v583
        %v586 = vshrl.u32 %v310, 16
        %v588 = vrot.slane %v586, 4
        %v589 = vshll.u32 %v310, 16
        %v591 = vrot.slane %v589, 5
        %v592 = vor.u32 %v588, %v591
        %v593 = vrot.slane %v592, 4
        %v595 = vshll.u32 %v311, 16
        %v597 = vrot.slane %v595, 5
        %v598 = vsel %vm464, %v593, %v597
        %v599 = vshrl.u32 %v311, 16
        %v601 = vrot.slane %v599, 4
        %v602 = vor.u32 %v601, %v597
        %v603 = vrot.slane %v602, 4
        %v605 = vshll.u32 %v312, 16
        %v607 = vrot.slane %v605, 5
        %v608 = vsel %vm464, %v603, %v607
        %v610 = vshrl.u32 %v313, 16
        %v612 = vrot.slane %v610, 4
        %v613 = vshll.u32 %v313, 16
        %v615 = vrot.slane %v613, 5
        %v616 = vor.u32 %v612, %v615
        %v617 = vrot.slane %v616, 4
        %v619 = vshll.u32 %v314, 16
        %v621 = vrot.slane %v619, 5
        %v622 = vsel %vm464, %v617, %v621
        %v623 = vshrl.u32 %v314, 16
        %v625 = vrot.slane %v623, 4
        %v626 = vor.u32 %v625, %v621
        %v627 = vrot.slane %v626, 4
        %v629 = vshll.u32 %v315, 16
        %v631 = vrot.slane %v629, 5
        %v632 = vsel %vm464, %v627, %v631
        %v634 = vshrl.u32 %v316, 16
        %v636 = vrot.slane %v634, 4
        %v637 = vshll.u32 %v316, 16
        %v639 = vrot.slane %v637, 5
        %v640 = vor.u32 %v636, %v639
        %v641 = vrot.slane %v640, 4
        %v643 = vshll.u32 %v317, 16
        %v645 = vrot.slane %v643, 5
        %v646 = vsel %vm464, %v641, %v645
        %v647 = vshrl.u32 %v317, 16
        %v649 = vrot.slane %v647, 4
        %v650 = vor.u32 %v649, %v645
        %v651 = vrot.slane %v650, 4
        %v653 = vshll.u32 %v318, 16
        %v655 = vrot.slane %v653, 5
        %v656 = vsel %vm464, %v651, %v655
        %v658 = vshrl.u32 %v319, 16
        %v660 = vrot.slane %v658, 4
        %v661 = vshll.u32 %v319, 16
        %v663 = vrot.slane %v661, 5
        %v664 = vor.u32 %v660, %v663
        %v665 = vrot.slane %v664, 4
        %v667 = vshll.u32 %v320, 16
        %v669 = vrot.slane %v667, 5
        %v670 = vsel %vm464, %v665, %v669
        %v671 = vshrl.u32 %v320, 16
        %v673 = vrot.slane %v671, 4
        %v674 = vor.u32 %v673, %v669
        %v675 = vrot.slane %v674, 4
        %v677 = vshll.u32 %v321, 16
        %v679 = vrot.slane %v677, 5
        %v680 = vsel %vm464, %v675, %v679
        %v682 = vshrl.u32 %v322, 16
        %v684 = vrot.slane %v682, 4
        %v685 = vshll.u32 %v322, 16
        %v687 = vrot.slane %v685, 5
        %v688 = vor.u32 %v684, %v687
        %v689 = vrot.slane %v688, 4
        %v691 = vshll.u32 %v323, 16
        %v693 = vrot.slane %v691, 5
        %v694 = vsel %vm464, %v689, %v693
        %v695 = vshrl.u32 %v323, 16
        %v697 = vrot.slane %v695, 4
        %v698 = vor.u32 %v697, %v693
        %v699 = vrot.slane %v698, 4
        %v701 = vshll.u32 %v324, 16
        %v703 = vrot.slane %v701, 5
        %v704 = vsel %vm464, %v699, %v703
        %v706 = vshrl.u32 %v325, 16
        %v708 = vrot.slane %v706, 4
        %v709 = vshll.u32 %v325, 16
        %v711 = vrot.slane %v709, 5
        %v712 = vor.u32 %v708, %v711
        %v713 = vrot.slane %v712, 4
        %v715 = vshll.u32 %v326, 16
        %v717 = vrot.slane %v715, 5
        %v718 = vsel %vm464, %v713, %v717
        %v719 = vshrl.u32 %v326, 16
        %v721 = vrot.slane %v719, 4
        %v722 = vor.u32 %v721, %v717
        %v723 = vrot.slane %v722, 4
        %v725 = vshll.u32 %v327, 16
        %v727 = vrot.slane %v725, 5
        %v728 = vsel %vm464, %v723, %v727
        %v730 = vshrl.u32 %v328, 16
        %v732 = vrot.slane %v730, 4
        %v733 = vshll.u32 %v328, 16
        %v735 = vrot.slane %v733, 5
        %v736 = vor.u32 %v732, %v735
        %v737 = vrot.slane %v736, 4
        %v739 = vshll.u32 %v329, 16
        %v741 = vrot.slane %v739, 5
        %v742 = vsel %vm464, %v737, %v741
        %v743 = vshrl.u32 %v329, 16
        %v745 = vrot.slane %v743, 4
        %v746 = vor.u32 %v745, %v741
        %v747 = vrot.slane %v746, 4
        %v749 = vshll.u32 %v330, 16
        %v751 = vrot.slane %v749, 5
        %v752 = vsel %vm464, %v747, %v751
        %v754 = vshrl.u32 %v331, 16
        %v756 = vrot.slane %v754, 4
        %v757 = vshll.u32 %v331, 16
        %v759 = vrot.slane %v757, 5
        %v760 = vor.u32 %v756, %v759
        %v761 = vrot.slane %v760, 4
        %v763 = vshll.u32 %v332, 16
        %v765 = vrot.slane %v763, 5
        %v766 = vsel %vm464, %v761, %v765
        %v767 = vshrl.u32 %v332, 16
        %v769 = vrot.slane %v767, 4
        %v770 = vor.u32 %v769, %v765
        %v771 = vrot.slane %v770, 4
        %v773 = vshll.u32 %v333, 16
        %v775 = vrot.slane %v773, 5
        %v776 = vsel %vm464, %v771, %v775
        %v778 = vshrl.u32 %v334, 16
        %v780 = vrot.slane %v778, 4
        %v781 = vshll.u32 %v334, 16
        %v783 = vrot.slane %v781, 5
        %v784 = vor.u32 %v780, %v783
        %v785 = vrot.slane %v784, 4
        %v787 = vshll.u32 %v335, 16
        %v789 = vrot.slane %v787, 5
        %v790 = vsel %vm464, %v785, %v789
        %v791 = vshrl.u32 %v335, 16
        %v793 = vrot.slane %v791, 4
        %v794 = vor.u32 %v793, %v789
        %v795 = vrot.slane %v794, 4
        %v797 = vshll.u32 %v336, 16
        %v799 = vrot.slane %v797, 5
        %v800 = vsel %vm464, %v795, %v799
        %v802 = vshrl.u32 %v337, 16
        %v804 = vrot.slane %v802, 4
        %v805 = vshll.u32 %v337, 16
        %v807 = vrot.slane %v805, 5
        %v808 = vor.u32 %v804, %v807
        %v809 = vrot.slane %v808, 4
        %v811 = vshll.u32 %v338, 16
        %v813 = vrot.slane %v811, 5
        %v814 = vsel %vm464, %v809, %v813
        %v815 = vshrl.u32 %v338, 16
        %v817 = vrot.slane %v815, 4
        %v818 = vor.u32 %v817, %v813
        %v819 = vrot.slane %v818, 4
        %v821 = vshll.u32 %v339, 16
        %v823 = vrot.slane %v821, 5
        %v824 = vsel %vm464, %v819, %v823
        %v826 = vshrl.u32 %v340, 16
        %v828 = vrot.slane %v826, 4
        %v829 = vshll.u32 %v340, 16
        %v831 = vrot.slane %v829, 5
        %v832 = vor.u32 %v828, %v831
        %v833 = vrot.slane %v832, 4
        %v835 = vshll.u32 %v341, 16
        %v837 = vrot.slane %v835, 5
        %v838 = vsel %vm464, %v833, %v837
        %v839 = vshrl.u32 %v341, 16
        %v841 = vrot.slane %v839, 4
        %v842 = vor.u32 %v841, %v837
        %v843 = vrot.slane %v842, 4
        %v845 = vshll.u32 %v342, 16
        %v847 = vrot.slane %v845, 5
        %v848 = vsel %vm464, %v843, %v847
        %v849 = vunpack.c.l.b16 %v478
        %v850 = vunpack.c.l.b16 %v488
        %v851 = vunpack.c.l.b16 %v502
        %v852 = vunpack.c.l.b16 %v512
        %v853 = vunpack.c.l.b16 %v526
        %v854 = vunpack.c.l.b16 %v536
        %v855 = vunpack.c.l.b16 %v550
        %v856 = vunpack.c.l.b16 %v560
        %v857 = vunpack.c.l.b16 %v574
        %v858 = vunpack.c.l.b16 %v584
        %v859 = vunpack.c.l.b16 %v598
        %v860 = vunpack.c.l.b16 %v608
        %v861 = vunpack.c.l.b16 %v622
        %v862 = vunpack.c.l.b16 %v632
        %v863 = vunpack.c.l.b16 %v646
        %v864 = vunpack.c.l.b16 %v656
        %v865 = vunpack.c.l.b16 %v670
        %v866 = vunpack.c.l.b16 %v680
        %v867 = vunpack.c.l.b16 %v694
        %v868 = vunpack.c.l.b16 %v704
        %v869 = vunpack.c.l.b16 %v718
        %v870 = vunpack.c.l.b16 %v728
        %v871 = vunpack.c.l.b16 %v742
        %v872 = vunpack.c.l.b16 %v752
        %v873 = vunpack.c.l.b16 %v766
        %v874 = vunpack.c.l.b16 %v776
        %v875 = vunpack.c.l.b16 %v790
        %v876 = vunpack.c.l.b16 %v800
        %v877 = vunpack.c.l.b16 %v814
        %v878 = vunpack.c.l.b16 %v824
        %v879 = vunpack.c.l.b16 %v838
        %v880 = vunpack.c.l.b16 %v848
        %v881 = vpack.c.b16 %v850, %v849
        %v882 = vpack.c.b16 %v852, %v851
        %v883 = vpack.c.b16 %v854, %v853
        %v884 = vpack.c.b16 %v856, %v855
        %v885 = vpack.c.b16 %v858, %v857
        %v886 = vpack.c.b16 %v860, %v859
        %v887 = vpack.c.b16 %v862, %v861
        %v888 = vpack.c.b16 %v864, %v863
        %v889 = vpack.c.b16 %v866, %v865
        %v890 = vpack.c.b16 %v868, %v867
        %v891 = vpack.c.b16 %v870, %v869
        %v892 = vpack.c.b16 %v872, %v871
        %v893 = vpack.c.b16 %v874, %v873
        %v894 = vpack.c.b16 %v876, %v875
        %v895 = vpack.c.b16 %v878, %v877
        %v896 = vpack.c.b16 %v880, %v879
        %897 = vrot.lane.b32.xlu0 %v881, 4
        %v898 = vpop.permute.xlu0 %897
        %899 = vrot.lane.b32.xlu0 %v882, 4
        %v900 = vpop.permute.xlu0 %899
        %901 = vrot.lane.b32.xlu0 %v883, 4
        %v902 = vpop.permute.xlu0 %901
        %903 = vrot.lane.b32.xlu0 %v884, 4
        %v904 = vpop.permute.xlu0 %903
        %905 = vrot.lane.b32.xlu0 %v885, 4
        %v906 = vpop.permute.xlu0 %905
        %907 = vrot.lane.b32.xlu0 %v886, 4
        %v908 = vpop.permute.xlu0 %907
        %909 = vrot.lane.b32.xlu0 %v887, 4
        %v910 = vpop.permute.xlu0 %909
        %911 = vrot.lane.b32.xlu0 %v888, 4
        %v912 = vpop.permute.xlu0 %911
        %913 = vrot.lane.b32.xlu0 %v889, 4
        %v914 = vpop.permute.xlu0 %913
        %915 = vrot.lane.b32.xlu0 %v890, 4
        %v916 = vpop.permute.xlu0 %915
        %917 = vrot.lane.b32.xlu0 %v891, 4
        %v918 = vpop.permute.xlu0 %917
        %919 = vrot.lane.b32.xlu0 %v892, 4
        %v920 = vpop.permute.xlu0 %919
        %921 = vrot.lane.b32.xlu0 %v893, 4
        %v922 = vpop.permute.xlu0 %921
        %923 = vrot.lane.b32.xlu0 %v894, 4
        %v924 = vpop.permute.xlu0 %923
        %925 = vrot.lane.b32.xlu0 %v895, 4
        %v926 = vpop.permute.xlu0 %925
        %927 = vrot.lane.b32.xlu0 %v896, 4
        %v928 = vpop.permute.xlu0 %927
        %vm945 = vcmask 64544
        %946 = vst.msk [vmem:[#allocation3] sm:$0xff] %vm945, %v898
        %947 = vst.msk [vmem:[#allocation3 + $0x8] sm:$0xff] %vm945, %v900
        %948 = vst.msk [vmem:[#allocation3 + $0x10] sm:$0xff] %vm945, %v902
        %949 = vst.msk [vmem:[#allocation3 + $0x18] sm:$0xff] %vm945, %v904
        %950 = vst.msk [vmem:[#allocation3 + $0x20] sm:$0xff] %vm945, %v906
        %951 = vst.msk [vmem:[#allocation3 + $0x28] sm:$0xff] %vm945, %v908
        %952 = vst.msk [vmem:[#allocation3 + $0x30] sm:$0xff] %vm945, %v910
        %953 = vst.msk [vmem:[#allocation3 + $0x38] sm:$0xff] %vm945, %v912
        %954 = vst.msk [vmem:[#allocation3 + $0x40] sm:$0xff] %vm945, %v914
        %955 = vst.msk [vmem:[#allocation3 + $0x48] sm:$0xff] %vm945, %v916
        %956 = vst.msk [vmem:[#allocation3 + $0x50] sm:$0xff] %vm945, %v918
        %957 = vst.msk [vmem:[#allocation3 + $0x58] sm:$0xff] %vm945, %v920
        %958 = vst.msk [vmem:[#allocation3 + $0x60] sm:$0xff] %vm945, %v922
        %959 = vst.msk [vmem:[#allocation3 + $0x68] sm:$0xff] %vm945, %v924
        %960 = vst.msk [vmem:[#allocation3 + $0x70] sm:$0xff] %vm945, %v926
        %961 = vst.msk [vmem:[#allocation3 + $0x78] sm:$0xff] %vm945, %v928
        %vm978 = vcmask 1042432
        %vm979 = vcmask 1046532
        %vm980 = vmor %vm978, %vm979
        %v981 = vrot.slane %v295, 5
        %v982 = vrot.slane %v981, 4
        %v983 = vrot.slane %v296, 5
        %v984 = vsel %vm980, %v982, %v983
        %v985 = vrot.slane %v983, 4
        %v986 = vrot.slane %v297, 5
        %v987 = vsel %vm980, %v985, %v986
        %v988 = vrot.slane %v298, 5
        %v989 = vrot.slane %v988, 4
        %v990 = vrot.slane %v299, 5
        %v991 = vsel %vm980, %v989, %v990
        %v992 = vrot.slane %v990, 4
        %v993 = vrot.slane %v300, 5
        %v994 = vsel %vm980, %v992, %v993
        %v995 = vrot.slane %v301, 5
        %v996 = vrot.slane %v995, 4
        %v997 = vrot.slane %v302, 5
        %v998 = vsel %vm980, %v996, %v997
        %v999 = vrot.slane %v997, 4
        %v1000 = vrot.slane %v303, 5
        %v1001 = vsel %vm980, %v999, %v1000
        %v1002 = vrot.slane %v304, 5
        %v1003 = vrot.slane %v1002, 4
        %v1004 = vrot.slane %v305, 5
        %v1005 = vsel %vm980, %v1003, %v1004
        %v1006 = vrot.slane %v1004, 4
        %v1007 = vrot.slane %v306, 5
        %v1008 = vsel %vm980, %v1006, %v1007
        %v1009 = vrot.slane %v307, 5
        %v1010 = vrot.slane %v1009, 4
        %v1011 = vrot.slane %v308, 5
        %v1012 = vsel %vm980, %v1010, %v1011
        %v1013 = vrot.slane %v1011, 4
        %v1014 = vrot.slane %v309, 5
        %v1015 = vsel %vm980, %v1013, %v1014
        %v1016 = vrot.slane %v310, 5
        %v1017 = vrot.slane %v1016, 4
        %v1018 = vrot.slane %v311, 5
        %v1019 = vsel %vm980, %v1017, %v1018
        %v1020 = vrot.slane %v1018, 4
        %v1021 = vrot.slane %v312, 5
        %v1022 = vsel %vm980, %v1020, %v1021
        %v1023 = vrot.slane %v313, 5
        %v1024 = vrot.slane %v1023, 4
        %v1025 = vrot.slane %v314, 5
        %v1026 = vsel %vm980, %v1024, %v1025
        %v1027 = vrot.slane %v1025, 4
        %v1028 = vrot.slane %v315, 5
        %v1029 = vsel %vm980, %v1027, %v1028
        %v1030 = vrot.slane %v316, 5
        %v1031 = vrot.slane %v1030, 4
        %v1032 = vrot.slane %v317, 5
        %v1033 = vsel %vm980, %v1031, %v1032
        %v1034 = vrot.slane %v1032, 4
        %v1035 = vrot.slane %v318, 5
        %v1036 = vsel %vm980, %v1034, %v1035
        %v1037 = vrot.slane %v319, 5
        %v1038 = vrot.slane %v1037, 4
        %v1039 = vrot.slane %v320, 5
        %v1040 = vsel %vm980, %v1038, %v1039
        %v1041 = vrot.slane %v1039, 4
        %v1042 = vrot.slane %v321, 5
        %v1043 = vsel %vm980, %v1041, %v1042
        %v1044 = vrot.slane %v322, 5
        %v1045 = vrot.slane %v1044, 4
        %v1046 = vrot.slane %v323, 5
        %v1047 = vsel %vm980, %v1045, %v1046
        %v1048 = vrot.slane %v1046, 4
        %v1049 = vrot.slane %v324, 5
        %v1050 = vsel %vm980, %v1048, %v1049
        %v1051 = vrot.slane %v325, 5
        %v1052 = vrot.slane %v1051, 4
        %v1053 = vrot.slane %v326, 5
        %v1054 = vsel %vm980, %v1052, %v1053
        %v1055 = vrot.slane %v1053, 4
        %v1056 = vrot.slane %v327, 5
        %v1057 = vsel %vm980, %v1055, %v1056
        %v1058 = vrot.slane %v328, 5
        %v1059 = vrot.slane %v1058, 4
        %v1060 = vrot.slane %v329, 5
        %v1061 = vsel %vm980, %v1059, %v1060
        %v1062 = vrot.slane %v1060, 4
        %v1063 = vrot.slane %v330, 5
        %v1064 = vsel %vm980, %v1062, %v1063
        %v1065 = vrot.slane %v331, 5
        %v1066 = vrot.slane %v1065, 4
        %v1067 = vrot.slane %v332, 5
        %v1068 = vsel %vm980, %v1066, %v1067
        %v1069 = vrot.slane %v1067, 4
        %v1070 = vrot.slane %v333, 5
        %v1071 = vsel %vm980, %v1069, %v1070
        %v1072 = vrot.slane %v334, 5
        %v1073 = vrot.slane %v1072, 4
        %v1074 = vrot.slane %v335, 5
        %v1075 = vsel %vm980, %v1073, %v1074
        %v1076 = vrot.slane %v1074, 4
        %v1077 = vrot.slane %v336, 5
        %v1078 = vsel %vm980, %v1076, %v1077
        %v1079 = vrot.slane %v337, 5
        %v1080 = vrot.slane %v1079, 4
        %v1081 = vrot.slane %v338, 5
        %v1082 = vsel %vm980, %v1080, %v1081
        %v1083 = vrot.slane %v1081, 4
        %v1084 = vrot.slane %v339, 5
        %v1085 = vsel %vm980, %v1083, %v1084
        %v1086 = vrot.slane %v340, 5
        %v1087 = vrot.slane %v1086, 4
        %v1088 = vrot.slane %v341, 5
        %v1089 = vsel %vm980, %v1087, %v1088
        %v1090 = vrot.slane %v1088, 4
        %v1091 = vrot.slane %v342, 5
        %v1092 = vsel %vm980, %v1090, %v1091
        %v1093 = vunpack.c.l.b16 %v984
        %v1094 = vunpack.c.l.b16 %v987
        %v1095 = vunpack.c.l.b16 %v991
        %v1096 = vunpack.c.l.b16 %v994
        %v1097 = vunpack.c.l.b16 %v998
        %v1098 = vunpack.c.l.b16 %v1001
        %v1099 = vunpack.c.l.b16 %v1005
        %v1100 = vunpack.c.l.b16 %v1008
        %v1101 = vunpack.c.l.b16 %v1012
        %v1102 = vunpack.c.l.b16 %v1015
        %v1103 = vunpack.c.l.b16 %v1019
        %v1104 = vunpack.c.l.b16 %v1022
        %v1105 = vunpack.c.l.b16 %v1026
        %v1106 = vunpack.c.l.b16 %v1029
        %v1107 = vunpack.c.l.b16 %v1033
        %v1108 = vunpack.c.l.b16 %v1036
        %v1109 = vunpack.c.l.b16 %v1040
        %v1110 = vunpack.c.l.b16 %v1043
        %v1111 = vunpack.c.l.b16 %v1047
        %v1112 = vunpack.c.l.b16 %v1050
        %v1113 = vunpack.c.l.b16 %v1054
        %v1114 = vunpack.c.l.b16 %v1057
        %v1115 = vunpack.c.l.b16 %v1061
        %v1116 = vunpack.c.l.b16 %v1064
        %v1117 = vunpack.c.l.b16 %v1068
        %v1118 = vunpack.c.l.b16 %v1071
        %v1119 = vunpack.c.l.b16 %v1075
        %v1120 = vunpack.c.l.b16 %v1078
        %v1121 = vunpack.c.l.b16 %v1082
        %v1122 = vunpack.c.l.b16 %v1085
        %v1123 = vunpack.c.l.b16 %v1089
        %v1124 = vunpack.c.l.b16 %v1092
        %v1125 = vpack.c.b16 %v1094, %v1093
        %v1126 = vpack.c.b16 %v1096, %v1095
        %v1127 = vpack.c.b16 %v1098, %v1097
        %v1128 = vpack.c.b16 %v1100, %v1099
        %v1129 = vpack.c.b16 %v1102, %v1101
        %v1130 = vpack.c.b16 %v1104, %v1103
        %v1131 = vpack.c.b16 %v1106, %v1105
        %v1132 = vpack.c.b16 %v1108, %v1107
        %v1133 = vpack.c.b16 %v1110, %v1109
        %v1134 = vpack.c.b16 %v1112, %v1111
        %v1135 = vpack.c.b16 %v1114, %v1113
        %v1136 = vpack.c.b16 %v1116, %v1115
        %v1137 = vpack.c.b16 %v1118, %v1117
        %v1138 = vpack.c.b16 %v1120, %v1119
        %v1139 = vpack.c.b16 %v1122, %v1121
        %v1140 = vpack.c.b16 %v1124, %v1123
        %1141 = vrot.lane.b32.xlu0 %v1125, 8
        %v1142 = vpop.permute.xlu0 %1141
        %1143 = vrot.lane.b32.xlu0 %v1126, 8
        %v1144 = vpop.permute.xlu0 %1143
        %1145 = vrot.lane.b32.xlu0 %v1127, 8
        %v1146 = vpop.permute.xlu0 %1145
        %1147 = vrot.lane.b32.xlu0 %v1128, 8
        %v1148 = vpop.permute.xlu0 %1147
        %1149 = vrot.lane.b32.xlu0 %v1129, 8
        %v1150 = vpop.permute.xlu0 %1149
        %1151 = vrot.lane.b32.xlu0 %v1130, 8
        %v1152 = vpop.permute.xlu0 %1151
        %1153 = vrot.lane.b32.xlu0 %v1131, 8
        %v1154 = vpop.permute.xlu0 %1153
        %1155 = vrot.lane.b32.xlu0 %v1132, 8
        %v1156 = vpop.permute.xlu0 %1155
        %1157 = vrot.lane.b32.xlu0 %v1133, 8
        %v1158 = vpop.permute.xlu0 %1157
        %1159 = vrot.lane.b32.xlu0 %v1134, 8
        %v1160 = vpop.permute.xlu0 %1159
        %1161 = vrot.lane.b32.xlu0 %v1135, 8
        %v1162 = vpop.permute.xlu0 %1161
        %1163 = vrot.lane.b32.xlu0 %v1136, 8
        %v1164 = vpop.permute.xlu0 %1163
        %1165 = vrot.lane.b32.xlu0 %v1137, 8
        %v1166 = vpop.permute.xlu0 %1165
        %1167 = vrot.lane.b32.xlu0 %v1138, 8
        %v1168 = vpop.permute.xlu0 %1167
        %1169 = vrot.lane.b32.xlu0 %v1139, 8
        %v1170 = vpop.permute.xlu0 %1169
        %1171 = vrot.lane.b32.xlu0 %v1140, 8
        %v1172 = vpop.permute.xlu0 %1171
        %vm1189 = vcmask 97344
        %1190 = vst.msk [vmem:[#allocation3] sm:$0xff] %vm1189, %v1142
        %1191 = vst.msk [vmem:[#allocation3 + $0x8] sm:$0xff] %vm1189, %v1144
        %1192 = vst.msk [vmem:[#allocation3 + $0x10] sm:$0xff] %vm1189, %v1146
        %1193 = vst.msk [vmem:[#allocation3 + $0x18] sm:$0xff] %vm1189, %v1148
        %1194 = vst.msk [vmem:[#allocation3 + $0x20] sm:$0xff] %vm1189, %v1150
        %1195 = vst.msk [vmem:[#allocation3 + $0x28] sm:$0xff] %vm1189, %v1152
        %1196 = vst.msk [vmem:[#allocation3 + $0x30] sm:$0xff] %vm1189, %v1154
        %1197 = vst.msk [vmem:[#allocation3 + $0x38] sm:$0xff] %vm1189, %v1156
        %1198 = vst.msk [vmem:[#allocation3 + $0x40] sm:$0xff] %vm1189, %v1158
        %1199 = vst.msk [vmem:[#allocation3 + $0x48] sm:$0xff] %vm1189, %v1160
        %1200 = vst.msk [vmem:[#allocation3 + $0x50] sm:$0xff] %vm1189, %v1162
        %1201 = vst.msk [vmem:[#allocation3 + $0x58] sm:$0xff] %vm1189, %v1164
        %1202 = vst.msk [vmem:[#allocation3 + $0x60] sm:$0xff] %vm1189, %v1166
        %1203 = vst.msk [vmem:[#allocation3 + $0x68] sm:$0xff] %vm1189, %v1168
        %1204 = vst.msk [vmem:[#allocation3 + $0x70] sm:$0xff] %vm1189, %v1170
        %1205 = vst.msk [vmem:[#allocation3 + $0x78] sm:$0xff] %vm1189, %v1172
        %v1208 = vunpack.c.l.b16 %v343
        %v1209 = vunpack.c.l.b16 %v344
        %v1210 = vpack.c.b16 %v1209, %v1208
        %1211 = vrot.lane.b32.xlu0 %v414, 12
        %v1212 = vpop.permute.xlu0 %1211
        %1213 = vrot.lane.b32.xlu0 %v415, 12
        %v1214 = vpop.permute.xlu0 %1213
        %1215 = vrot.lane.b32.xlu0 %v416, 12
        %v1216 = vpop.permute.xlu0 %1215
        %1217 = vrot.lane.b32.xlu0 %v417, 12
        %v1218 = vpop.permute.xlu0 %1217
        %1219 = vrot.lane.b32.xlu0 %v418, 12
        %v1220 = vpop.permute.xlu0 %1219
        %1221 = vrot.lane.b32.xlu0 %v419, 12
        %v1222 = vpop.permute.xlu0 %1221
        %1223 = vrot.lane.b32.xlu0 %v420, 12
        %v1224 = vpop.permute.xlu0 %1223
        %1225 = vrot.lane.b32.xlu0 %v421, 12
        %v1226 = vpop.permute.xlu0 %1225
        %1227 = vrot.lane.b32.xlu0 %v422, 12
        %v1228 = vpop.permute.xlu0 %1227
        %1229 = vrot.lane.b32.xlu0 %v423, 12
        %v1230 = vpop.permute.xlu0 %1229
        %1231 = vrot.lane.b32.xlu0 %v424, 12
        %v1232 = vpop.permute.xlu0 %1231
        %1233 = vrot.lane.b32.xlu0 %v425, 12
        %v1234 = vpop.permute.xlu0 %1233
        %1235 = vrot.lane.b32.xlu0 %v426, 12
        %v1236 = vpop.permute.xlu0 %1235
        %1237 = vrot.lane.b32.xlu0 %v427, 12
        %v1238 = vpop.permute.xlu0 %1237
        %1239 = vrot.lane.b32.xlu0 %v428, 12
        %v1240 = vpop.permute.xlu0 %1239
        %1241 = vrot.lane.b32.xlu0 %v1210, 12
        %v1242 = vpop.permute.xlu0 %1241
        %vm1259 = vcmask 130144
        %1260 = vst.msk [vmem:[#allocation3] sm:$0xff] %vm1259, %v1212
        %1261 = vst.msk [vmem:[#allocation3 + $0x8] sm:$0xff] %vm1259, %v1214
        %1262 = vst.msk [vmem:[#allocation3 + $0x10] sm:$0xff] %vm1259, %v1216
        %1263 = vst.msk [vmem:[#allocation3 + $0x18] sm:$0xff] %vm1259, %v1218
        %1264 = vst.msk [vmem:[#allocation3 + $0x20] sm:$0xff] %vm1259, %v1220
        %1265 = vst.msk [vmem:[#allocation3 + $0x28] sm:$0xff] %vm1259, %v1222
        %1266 = vst.msk [vmem:[#allocation3 + $0x30] sm:$0xff] %vm1259, %v1224
        %1267 = vst.msk [vmem:[#allocation3 + $0x38] sm:$0xff] %vm1259, %v1226
        %1268 = vst.msk [vmem:[#allocation3 + $0x40] sm:$0xff] %vm1259, %v1228
        %1269 = vst.msk [vmem:[#allocation3 + $0x48] sm:$0xff] %vm1259, %v1230
        %1270 = vst.msk [vmem:[#allocation3 + $0x50] sm:$0xff] %vm1259, %v1232
        %1271 = vst.msk [vmem:[#allocation3 + $0x58] sm:$0xff] %vm1259, %v1234
        %1272 = vst.msk [vmem:[#allocation3 + $0x60] sm:$0xff] %vm1259, %v1236
        %1273 = vst.msk [vmem:[#allocation3 + $0x68] sm:$0xff] %vm1259, %v1238
        %1274 = vst.msk [vmem:[#allocation3 + $0x70] sm:$0xff] %vm1259, %v1240
        %1275 = vst.msk [vmem:[#allocation3 + $0x78] sm:$0xff] %vm1259, %v1242
        %v1277 = vshrl.u32 %v343, 16
        %v1279 = vrot.slane %v1277, 4
        %v1280 = vshll.u32 %v343, 16
        %v1282 = vrot.slane %v1280, 5
        %v1283 = vor.u32 %v1279, %v1282
        %v1284 = vrot.slane %v1283, 4
        %v1286 = vshll.u32 %v344, 16
        %v1288 = vrot.slane %v1286, 5
        %v1289 = vsel %vm464, %v1284, %v1288
        %v1290 = vshrl.u32 %v344, 16
        %v1292 = vrot.slane %v1290, 4
        %v1293 = vor.u32 %v1292, %v1288
        %v1294 = vrot.slane %v1293, 4
        %v1296 = vshll.u32 %v345, 16
        %v1298 = vrot.slane %v1296, 5
        %v1299 = vsel %vm464, %v1294, %v1298
        %v1300 = vunpack.c.l.b16 %v1289
        %v1301 = vunpack.c.l.b16 %v1299
        %v1302 = vpack.c.b16 %v1301, %v1300
        %1303 = vrot.lane.b32.xlu0 %v882, 16
        %v1304 = vpop.permute.xlu0 %1303
        %1305 = vrot.lane.b32.xlu0 %v883, 16
        %v1306 = vpop.permute.xlu0 %1305
        %1307 = vrot.lane.b32.xlu0 %v884, 16
        %v1308 = vpop.permute.xlu0 %1307
        %1309 = vrot.lane.b32.xlu0 %v885, 16
        %v1310 = vpop.permute.xlu0 %1309
        %1311 = vrot.lane.b32.xlu0 %v886, 16
        %v1312 = vpop.permute.xlu0 %1311
        %1313 = vrot.lane.b32.xlu0 %v887, 16
        %v1314 = vpop.permute.xlu0 %1313
        %1315 = vrot.lane.b32.xlu0 %v888, 16
        %v1316 = vpop.permute.xlu0 %1315
        %1317 = vrot.lane.b32.xlu0 %v889, 16
        %v1318 = vpop.permute.xlu0 %1317
        %1319 = vrot.lane.b32.xlu0 %v890, 16
        %v1320 = vpop.permute.xlu0 %1319
        %1321 = vrot.lane.b32.xlu0 %v891, 16
        %v1322 = vpop.permute.xlu0 %1321
        %1323 = vrot.lane.b32.xlu0 %v892, 16
        %v1324 = vpop.permute.xlu0 %1323
        %1325 = vrot.lane.b32.xlu0 %v893, 16
        %v1326 = vpop.permute.xlu0 %1325
        %1327 = vrot.lane.b32.xlu0 %v894, 16
        %v1328 = vpop.permute.xlu0 %1327
        %1329 = vrot.lane.b32.xlu0 %v895, 16
        %v1330 = vpop.permute.xlu0 %1329
        %1331 = vrot.lane.b32.xlu0 %v896, 16
        %v1332 = vpop.permute.xlu0 %1331
        %1333 = vrot.lane.b32.xlu0 %v1302, 16
        %v1334 = vpop.permute.xlu0 %1333
        %vm1351 = vcmask 162944
        %1352 = vst.msk [vmem:[#allocation3] sm:$0xff] %vm1351, %v1304
        %1353 = vst.msk [vmem:[#allocation3 + $0x8] sm:$0xff] %vm1351, %v1306
        %1354 = vst.msk [vmem:[#allocation3 + $0x10] sm:$0xff] %vm1351, %v1308
        %1355 = vst.msk [vmem:[#allocation3 + $0x18] sm:$0xff] %vm1351, %v1310
        %1356 = vst.msk [vmem:[#allocation3 + $0x20] sm:$0xff] %vm1351, %v1312
        %1357 = vst.msk [vmem:[#allocation3 + $0x28] sm:$0xff] %vm1351, %v1314
        %1358 = vst.msk [vmem:[#allocation3 + $0x30] sm:$0xff] %vm1351, %v1316
        %1359 = vst.msk [vmem:[#allocation3 + $0x38] sm:$0xff] %vm1351, %v1318
        %1360 = vst.msk [vmem:[#allocation3 + $0x40] sm:$0xff] %vm1351, %v1320
        %1361 = vst.msk [vmem:[#allocation3 + $0x48] sm:$0xff] %vm1351, %v1322
        %1362 = vst.msk [vmem:[#allocation3 + $0x50] sm:$0xff] %vm1351, %v1324
        %1363 = vst.msk [vmem:[#allocation3 + $0x58] sm:$0xff] %vm1351, %v1326
        %1364 = vst.msk [vmem:[#allocation3 + $0x60] sm:$0xff] %vm1351, %v1328
        %1365 = vst.msk [vmem:[#allocation3 + $0x68] sm:$0xff] %vm1351, %v1330
        %1366 = vst.msk [vmem:[#allocation3 + $0x70] sm:$0xff] %vm1351, %v1332
        %1367 = vst.msk [vmem:[#allocation3 + $0x78] sm:$0xff] %vm1351, %v1334
        %v1369 = vrot.slane %v343, 5
        %v1370 = vrot.slane %v1369, 4
        %v1371 = vrot.slane %v344, 5
        %v1372 = vsel %vm980, %v1370, %v1371
        %v1373 = vrot.slane %v1371, 4
        %v1374 = vrot.slane %v345, 5
        %v1375 = vsel %vm980, %v1373, %v1374
        %v1376 = vunpack.c.l.b16 %v1372
        %v1377 = vunpack.c.l.b16 %v1375
        %v1378 = vpack.c.b16 %v1377, %v1376
        %1379 = vrot.lane.b32.xlu0 %v1126, 20
        %v1380 = vpop.permute.xlu0 %1379
        %1381 = vrot.lane.b32.xlu0 %v1127, 20
        %v1382 = vpop.permute.xlu0 %1381
        %1383 = vrot.lane.b32.xlu0 %v1128, 20
        %v1384 = vpop.permute.xlu0 %1383
        %1385 = vrot.lane.b32.xlu0 %v1129, 20
        %v1386 = vpop.permute.xlu0 %1385
        %1387 = vrot.lane.b32.xlu0 %v1130, 20
        %v1388 = vpop.permute.xlu0 %1387
        %1389 = vrot.lane.b32.xlu0 %v1131, 20
        %v1390 = vpop.permute.xlu0 %1389
        %1391 = vrot.lane.b32.xlu0 %v1132, 20
        %v1392 = vpop.permute.xlu0 %1391
        %1393 = vrot.lane.b32.xlu0 %v1133, 20
        %v1394 = vpop.permute.xlu0 %1393
        %1395 = vrot.lane.b32.xlu0 %v1134, 20
        %v1396 = vpop.permute.xlu0 %1395
        %1397 = vrot.lane.b32.xlu0 %v1135, 20
        %v1398 = vpop.permute.xlu0 %1397
        %1399 = vrot.lane.b32.xlu0 %v1136, 20
        %v1400 = vpop.permute.xlu0 %1399
        %1401 = vrot.lane.b32.xlu0 %v1137, 20
        %v1402 = vpop.permute.xlu0 %1401
        %1403 = vrot.lane.b32.xlu0 %v1138, 20
        %v1404 = vpop.permute.xlu0 %1403
        %1405 = vrot.lane.b32.xlu0 %v1139, 20
        %v1406 = vpop.permute.xlu0 %1405
        %1407 = vrot.lane.b32.xlu0 %v1140, 20
        %v1408 = vpop.permute.xlu0 %1407
        %1409 = vrot.lane.b32.xlu0 %v1378, 20
        %v1410 = vpop.permute.xlu0 %1409
        %vm1427 = vcmask 195744
        %1428 = vst.msk [vmem:[#allocation3] sm:$0xff] %vm1427, %v1380
        %1429 = vst.msk [vmem:[#allocation3 + $0x8] sm:$0xff] %vm1427, %v1382
        %1430 = vst.msk [vmem:[#allocation3 + $0x10] sm:$0xff] %vm1427, %v1384
        %1431 = vst.msk [vmem:[#allocation3 + $0x18] sm:$0xff] %vm1427, %v1386
        %1432 = vst.msk [vmem:[#allocation3 + $0x20] sm:$0xff] %vm1427, %v1388
        %1433 = vst.msk [vmem:[#allocation3 + $0x28] sm:$0xff] %vm1427, %v1390
        %1434 = vst.msk [vmem:[#allocation3 + $0x30] sm:$0xff] %vm1427, %v1392
        %1435 = vst.msk [vmem:[#allocation3 + $0x38] sm:$0xff] %vm1427, %v1394
        %1436 = vst.msk [vmem:[#allocation3 + $0x40] sm:$0xff] %vm1427, %v1396
        %1437 = vst.msk [vmem:[#allocation3 + $0x48] sm:$0xff] %vm1427, %v1398
        %1438 = vst.msk [vmem:[#allocation3 + $0x50] sm:$0xff] %vm1427, %v1400
        %1439 = vst.msk [vmem:[#allocation3 + $0x58] sm:$0xff] %vm1427, %v1402
        %1440 = vst.msk [vmem:[#allocation3 + $0x60] sm:$0xff] %vm1427, %v1404
        %1441 = vst.msk [vmem:[#allocation3 + $0x68] sm:$0xff] %vm1427, %v1406
        %1442 = vst.msk [vmem:[#allocation3 + $0x70] sm:$0xff] %vm1427, %v1408
        %1443 = vst.msk [vmem:[#allocation3 + $0x78] sm:$0xff] %vm1427, %v1410
        %v1446 = vunpack.c.l.b16 %v346
        %v1447 = vunpack.c.l.b16 %v347
        %v1448 = vpack.c.b16 %v1447, %v1446
        %1449 = vrot.lane.b32.xlu0 %v415, 24
        %v1450 = vpop.permute.xlu0 %1449
        %1451 = vrot.lane.b32.xlu0 %v416, 24
        %v1452 = vpop.permute.xlu0 %1451
        %1453 = vrot.lane.b32.xlu0 %v417, 24
        %v1454 = vpop.permute.xlu0 %1453
        %1455 = vrot.lane.b32.xlu0 %v418, 24
        %v1456 = vpop.permute.xlu0 %1455
        %1457 = vrot.lane.b32.xlu0 %v419, 24
        %v1458 = vpop.permute.xlu0 %1457
        %1459 = vrot.lane.b32.xlu0 %v420, 24
        %v1460 = vpop.permute.xlu0 %1459
        %1461 = vrot.lane.b32.xlu0 %v421, 24
        %v1462 = vpop.permute.xlu0 %1461
        %1463 = vrot.lane.b32.xlu0 %v422, 24
        %v1464 = vpop.permute.xlu0 %1463
        %1465 = vrot.lane.b32.xlu0 %v423, 24
        %v1466 = vpop.permute.xlu0 %1465
        %1467 = vrot.lane.b32.xlu0 %v424, 24
        %v1468 = vpop.permute.xlu0 %1467
        %1469 = vrot.lane.b32.xlu0 %v425, 24
        %v1470 = vpop.permute.xlu0 %1469
        %1471 = vrot.lane.b32.xlu0 %v426, 24
        %v1472 = vpop.permute.xlu0 %1471
        %1473 = vrot.lane.b32.xlu0 %v427, 24
        %v1474 = vpop.permute.xlu0 %1473
        %1475 = vrot.lane.b32.xlu0 %v428, 24
        %v1476 = vpop.permute.xlu0 %1475
        %1477 = vrot.lane.b32.xlu0 %v1210, 24
        %v1478 = vpop.permute.xlu0 %1477
        %1479 = vrot.lane.b32.xlu0 %v1448, 24
        %v1480 = vpop.permute.xlu0 %1479
        %vm1497 = vcmask 228544
        %1498 = vst.msk [vmem:[#allocation3] sm:$0xff] %vm1497, %v1450
        %1499 = vst.msk [vmem:[#allocation3 + $0x8] sm:$0xff] %vm1497, %v1452
        %1500 = vst.msk [vmem:[#allocation3 + $0x10] sm:$0xff] %vm1497, %v1454
        %1501 = vst.msk [vmem:[#allocation3 + $0x18] sm:$0xff] %vm1497, %v1456
        %1502 = vst.msk [vmem:[#allocation3 + $0x20] sm:$0xff] %vm1497, %v1458
        %1503 = vst.msk [vmem:[#allocation3 + $0x28] sm:$0xff] %vm1497, %v1460
        %1504 = vst.msk [vmem:[#allocation3 + $0x30] sm:$0xff] %vm1497, %v1462
        %1505 = vst.msk [vmem:[#allocation3 + $0x38] sm:$0xff] %vm1497, %v1464
        %1506 = vst.msk [vmem:[#allocation3 + $0x40] sm:$0xff] %vm1497, %v1466
        %1507 = vst.msk [vmem:[#allocation3 + $0x48] sm:$0xff] %vm1497, %v1468
        %1508 = vst.msk [vmem:[#allocation3 + $0x50] sm:$0xff] %vm1497, %v1470
        %1509 = vst.msk [vmem:[#allocation3 + $0x58] sm:$0xff] %vm1497, %v1472
        %1510 = vst.msk [vmem:[#allocation3 + $0x60] sm:$0xff] %vm1497, %v1474
        %1511 = vst.msk [vmem:[#allocation3 + $0x68] sm:$0xff] %vm1497, %v1476
        %1512 = vst.msk [vmem:[#allocation3 + $0x70] sm:$0xff] %vm1497, %v1478
        %1513 = vst.msk [vmem:[#allocation3 + $0x78] sm:$0xff] %vm1497, %v1480
        %v1515 = vshrl.u32 %v346, 16
        %v1517 = vrot.slane %v1515, 4
        %v1518 = vshll.u32 %v346, 16
        %v1520 = vrot.slane %v1518, 5
        %v1521 = vor.u32 %v1517, %v1520
        %v1522 = vrot.slane %v1521, 4
        %v1524 = vshll.u32 %v347, 16
        %v1526 = vrot.slane %v1524, 5
        %v1527 = vsel %vm464, %v1522, %v1526
        %v1528 = vshrl.u32 %v347, 16
        %v1530 = vrot.slane %v1528, 4
        %v1531 = vor.u32 %v1530, %v1526
        %v1532 = vrot.slane %v1531, 4
        %v1534 = vshll.u32 %v348, 16
        %v1536 = vrot.slane %v1534, 5
        %v1537 = vsel %vm464, %v1532, %v1536
        %v1538 = vunpack.c.l.b16 %v1527
        %v1539 = vunpack.c.l.b16 %v1537
        %v1540 = vpack.c.b16 %v1539, %v1538
        %1541 = vrot.lane.b32.xlu0 %v883, 28
        %v1542 = vpop.permute.xlu0 %1541
        %1543 = vrot.lane.b32.xlu0 %v884, 28
        %v1544 = vpop.permute.xlu0 %1543
        %1545 = vrot.lane.b32.xlu0 %v885, 28
        %v1546 = vpop.permute.xlu0 %1545
        %1547 = vrot.lane.b32.xlu0 %v886, 28
        %v1548 = vpop.permute.xlu0 %1547
        %1549 = vrot.lane.b32.xlu0 %v887, 28
        %v1550 = vpop.permute.xlu0 %1549
        %1551 = vrot.lane.b32.xlu0 %v888, 28
        %v1552 = vpop.permute.xlu0 %1551
        %1553 = vrot.lane.b32.xlu0 %v889, 28
        %v1554 = vpop.permute.xlu0 %1553
        %1555 = vrot.lane.b32.xlu0 %v890, 28
        %v1556 = vpop.permute.xlu0 %1555
        %1557 = vrot.lane.b32.xlu0 %v891, 28
        %v1558 = vpop.permute.xlu0 %1557
        %1559 = vrot.lane.b32.xlu0 %v892, 28
        %v1560 = vpop.permute.xlu0 %1559
        %1561 = vrot.lane.b32.xlu0 %v893, 28
        %v1562 = vpop.permute.xlu0 %1561
        %1563 = vrot.lane.b32.xlu0 %v894, 28
        %v1564 = vpop.permute.xlu0 %1563
        %1565 = vrot.lane.b32.xlu0 %v895, 28
        %v1566 = vpop.permute.xlu0 %1565
        %1567 = vrot.lane.b32.xlu0 %v896, 28
        %v1568 = vpop.permute.xlu0 %1567
        %1569 = vrot.lane.b32.xlu0 %v1302, 28
        %v1570 = vpop.permute.xlu0 %1569
        %1571 = vrot.lane.b32.xlu0 %v1540, 28
        %v1572 = vpop.permute.xlu0 %1571
        %vm1589 = vcmask 261344
        %1590 = vst.msk [vmem:[#allocation3] sm:$0xff] %vm1589, %v1542
        %1591 = vst.msk [vmem:[#allocation3 + $0x8] sm:$0xff] %vm1589, %v1544
        %1592 = vst.msk [vmem:[#allocation3 + $0x10] sm:$0xff] %vm1589, %v1546
        %1593 = vst.msk [vmem:[#allocation3 + $0x18] sm:$0xff] %vm1589, %v1548
        %1594 = vst.msk [vmem:[#allocation3 + $0x20] sm:$0xff] %vm1589, %v1550
        %1595 = vst.msk [vmem:[#allocation3 + $0x28] sm:$0xff] %vm1589, %v1552
        %1596 = vst.msk [vmem:[#allocation3 + $0x30] sm:$0xff] %vm1589, %v1554
        %1597 = vst.msk [vmem:[#allocation3 + $0x38] sm:$0xff] %vm1589, %v1556
        %1598 = vst.msk [vmem:[#allocation3 + $0x40] sm:$0xff] %vm1589, %v1558
        %1599 = vst.msk [vmem:[#allocation3 + $0x48] sm:$0xff] %vm1589, %v1560
        %1600 = vst.msk [vmem:[#allocation3 + $0x50] sm:$0xff] %vm1589, %v1562
        %1601 = vst.msk [vmem:[#allocation3 + $0x58] sm:$0xff] %vm1589, %v1564
        %1602 = vst.msk [vmem:[#allocation3 + $0x60] sm:$0xff] %vm1589, %v1566
        %1603 = vst.msk [vmem:[#allocation3 + $0x68] sm:$0xff] %vm1589, %v1568
        %1604 = vst.msk [vmem:[#allocation3 + $0x70] sm:$0xff] %vm1589, %v1570
        %1605 = vst.msk [vmem:[#allocation3 + $0x78] sm:$0xff] %vm1589, %v1572
        %v1607 = vrot.slane %v346, 5
        %v1608 = vrot.slane %v1607, 4
        %v1609 = vrot.slane %v347, 5
        %v1610 = vsel %vm980, %v1608, %v1609
        %v1611 = vrot.slane %v1609, 4
        %v1612 = vrot.slane %v348, 5
        %v1613 = vsel %vm980, %v1611, %v1612
        %v1614 = vunpack.c.l.b16 %v1610
        %v1615 = vunpack.c.l.b16 %v1613
        %v1616 = vpack.c.b16 %v1615, %v1614
        %1617 = vrot.lane.b32.xlu0 %v1127, 32
        %v1618 = vpop.permute.xlu0 %1617
        %1619 = vrot.lane.b32.xlu0 %v1128, 32
        %v1620 = vpop.permute.xlu0 %1619
        %1621 = vrot.lane.b32.xlu0 %v1129, 32
        %v1622 = vpop.permute.xlu0 %1621
        %1623 = vrot.lane.b32.xlu0 %v1130, 32
        %v1624 = vpop.permute.xlu0 %1623
        %1625 = vrot.lane.b32.xlu0 %v1131, 32
        %v1626 = vpop.permute.xlu0 %1625
        %1627 = vrot.lane.b32.xlu0 %v1132, 32
        %v1628 = vpop.permute.xlu0 %1627
        %1629 = vrot.lane.b32.xlu0 %v1133, 32
        %v1630 = vpop.permute.xlu0 %1629
        %1631 = vrot.lane.b32.xlu0 %v1134, 32
        %v1632 = vpop.permute.xlu0 %1631
        %1633 = vrot.lane.b32.xlu0 %v1135, 32
        %v1634 = vpop.permute.xlu0 %1633
        %1635 = vrot.lane.b32.xlu0 %v1136, 32
        %v1636 = vpop.permute.xlu0 %1635
        %1637 = vrot.lane.b32.xlu0 %v1137, 32
        %v1638 = vpop.permute.xlu0 %1637
        %1639 = vrot.lane.b32.xlu0 %v1138, 32
        %v1640 = vpop.permute.xlu0 %1639
        %1641 = vrot.lane.b32.xlu0 %v1139, 32
        %v1642 = vpop.permute.xlu0 %1641
        %1643 = vrot.lane.b32.xlu0 %v1140, 32
        %v1644 = vpop.permute.xlu0 %1643
        %1645 = vrot.lane.b32.xlu0 %v1378, 32
        %v1646 = vpop.permute.xlu0 %1645
        %1647 = vrot.lane.b32.xlu0 %v1616, 32
        %v1648 = vpop.permute.xlu0 %1647
        %vm1665 = vcmask 294144
        %1666 = vst.msk [vmem:[#allocation3] sm:$0xff] %vm1665, %v1618
        %1667 = vst.msk [vmem:[#allocation3 + $0x8] sm:$0xff] %vm1665, %v1620
        %1668 = vst.msk [vmem:[#allocation3 + $0x10] sm:$0xff] %vm1665, %v1622
        %1669 = vst.msk [vmem:[#allocation3 + $0x18] sm:$0xff] %vm1665, %v1624
        %1670 = vst.msk [vmem:[#allocation3 + $0x20] sm:$0xff] %vm1665, %v1626
        %1671 = vst.msk [vmem:[#allocation3 + $0x28] sm:$0xff] %vm1665, %v1628
        %1672 = vst.msk [vmem:[#allocation3 + $0x30] sm:$0xff] %vm1665, %v1630
        %1673 = vst.msk [vmem:[#allocation3 + $0x38] sm:$0xff] %vm1665, %v1632
        %1674 = vst.msk [vmem:[#allocation3 + $0x40] sm:$0xff] %vm1665, %v1634
        %1675 = vst.msk [vmem:[#allocation3 + $0x48] sm:$0xff] %vm1665, %v1636
        %1676 = vst.msk [vmem:[#allocation3 + $0x50] sm:$0xff] %vm1665, %v1638
        %1677 = vst.msk [vmem:[#allocation3 + $0x58] sm:$0xff] %vm1665, %v1640
        %1678 = vst.msk [vmem:[#allocation3 + $0x60] sm:$0xff] %vm1665, %v1642
        %1679 = vst.msk [vmem:[#allocation3 + $0x68] sm:$0xff] %vm1665, %v1644
        %1680 = vst.msk [vmem:[#allocation3 + $0x70] sm:$0xff] %vm1665, %v1646
        %1681 = vst.msk [vmem:[#allocation3 + $0x78] sm:$0xff] %vm1665, %v1648
        %v1682 = vld [vmem:[#allocation2] sm:$0xff]
        %v1683 = vld [vmem:[#allocation2 + $0x8] sm:$0xff]
        %v1684 = vld [vmem:[#allocation2 + $0x10] sm:$0xff]
        %v1685 = vld [vmem:[#allocation2 + $0x18] sm:$0xff]
        %v1686 = vld [vmem:[#allocation2 + $0x20] sm:$0xff]
        %v1687 = vld [vmem:[#allocation2 + $0x28] sm:$0xff]
        %v1688 = vld [vmem:[#allocation2 + $0x30] sm:$0xff]
        %v1689 = vld [vmem:[#allocation2 + $0x38] sm:$0xff]
        %v1690 = vld [vmem:[#allocation2 + $0x40] sm:$0xff]
        %v1691 = vld [vmem:[#allocation2 + $0x48] sm:$0xff]
        %v1692 = vld [vmem:[#allocation2 + $0x50] sm:$0xff]
        %v1693 = vld [vmem:[#allocation2 + $0x58] sm:$0xff]
        %v1694 = vld [vmem:[#allocation2 + $0x60] sm:$0xff]
        %v1695 = vld [vmem:[#allocation2 + $0x68] sm:$0xff]
        %v1696 = vld [vmem:[#allocation2 + $0x70] sm:$0xff]
        %v1697 = vld [vmem:[#allocation2 + $0x78] sm:$0xff]
        %v1698 = vld [vmem:[#allocation2 + $0x80] sm:$0xff]
        %v1699 = vld [vmem:[#allocation2 + $0x88] sm:$0xff]
        %v1700 = vld [vmem:[#allocation2 + $0x90] sm:$0xff]
        %v1701 = vld [vmem:[#allocation2 + $0x98] sm:$0xff]
        %v1702 = vld [vmem:[#allocation2 + $0xa0] sm:$0xff]
        %v1703 = vld [vmem:[#allocation2 + $0xa8] sm:$0xff]
        %v1704 = vld [vmem:[#allocation2 + $0xb0] sm:$0xff]
        %v1705 = vld [vmem:[#allocation2 + $0xb8] sm:$0xff]
        %v1706 = vld [vmem:[#allocation2 + $0xc0] sm:$0xff]
        %v1707 = vld [vmem:[#allocation2 + $0xc8] sm:$0xff]
        %v1708 = vld [vmem:[#allocation2 + $0xd0] sm:$0xff]
        %v1709 = vld [vmem:[#allocation2 + $0xd8] sm:$0xff]
        %v1710 = vld [vmem:[#allocation2 + $0xe0] sm:$0xff]
        %v1711 = vld [vmem:[#allocation2 + $0xe8] sm:$0xff]
        %v1712 = vld [vmem:[#allocation2 + $0xf0] sm:$0xff]
        %v1713 = vld [vmem:[#allocation2 + $0xf8] sm:$0xff]
        %v1714 = vld [vmem:[#allocation3] sm:$0xff]
        %v1715 = vld [vmem:[#allocation3 + $0x8] sm:$0xff]
        %v1716 = vld [vmem:[#allocation3 + $0x10] sm:$0xff]
        %v1717 = vld [vmem:[#allocation3 + $0x18] sm:$0xff]
        %v1718 = vld [vmem:[#allocation3 + $0x20] sm:$0xff]
        %v1719 = vld [vmem:[#allocation3 + $0x28] sm:$0xff]
        %v1720 = vld [vmem:[#allocation3 + $0x30] sm:$0xff]
        %v1721 = vld [vmem:[#allocation3 + $0x38] sm:$0xff]
        %v1722 = vld [vmem:[#allocation3 + $0x40] sm:$0xff]
        %v1723 = vld [vmem:[#allocation3 + $0x48] sm:$0xff]
        %v1724 = vld [vmem:[#allocation3 + $0x50] sm:$0xff]
        %v1725 = vld [vmem:[#allocation3 + $0x58] sm:$0xff]
        %v1726 = vld [vmem:[#allocation3 + $0x60] sm:$0xff]
        %v1727 = vld [vmem:[#allocation3 + $0x68] sm:$0xff]
        %v1728 = vld [vmem:[#allocation3 + $0x70] sm:$0xff]
        %v1729 = vld [vmem:[#allocation3 + $0x78] sm:$0xff]
        %v1730 = vld [vmem:[%s257] sm:$0xf]
        %v1731 = vld [vmem:[%s257 + $0x4] sm:$0xf]
        %v1732 = vld [vmem:[%s257 + $0x8] sm:$0xf]
        %v1733 = vld [vmem:[%s257 + $0xc] sm:$0xf]
        %v1734 = vld [vmem:[%s257 + $0x10] sm:$0x3]
        %v1740 = vunpack.c.l.b16 %v1730
        %v1741 = vunpack.c.l.b16 %v1731
        %v1742 = vunpack.c.l.b16 %v1732
        %v1743 = vunpack.c.l.b16 %v1733
        %v1744 = vunpack.c.l.b16 %v1734
        %v1745 = vpack.c.b16 %v1741, %v1740
        %v1746 = vpack.c.b16 %v1743, %v1742
        %v1747 = vpack.c.b16 %v1744, %v1744
        %vm1750 = vcmask 293888
        %v1752 = vsel %vm1750, %v1714, 0
        %v1755 = vsel %vm1750, %v1715, 0
        %v1758 = vsel %vm1750, %v1716, 0
        %v1761 = vsel %vm1750, %v1717, 0
        %v1764 = vsel %vm1750, %v1718, 0
        %v1767 = vsel %vm1750, %v1719, 0
        %v1770 = vsel %vm1750, %v1720, 0
        %v1773 = vsel %vm1750, %v1721, 0
        %v1776 = vsel %vm1750, %v1722, 0
        %v1779 = vsel %vm1750, %v1723, 0
        %v1782 = vsel %vm1750, %v1724, 0
        %v1785 = vsel %vm1750, %v1725, 0
        %v1788 = vsel %vm1750, %v1726, 0
        %v1791 = vsel %vm1750, %v1727, 0
        %v1794 = vsel %vm1750, %v1728, 0
        %v1797 = vsel %vm1750, %v1729, 0
        %vm1799 = vcmask 1041408
        %v1801 = vsel %vm1799, %v1747, 0
        %1803 = vmatprep.subr.bf16.mxu0 0
        %1804 = vmatpush1.bf16.msra.mxu0 %v1745
        %1805 = vmatprep.subr.bf16.mxu0 0
        %1806 = vmatpush1.bf16.msra.mxu0 %v1746
        %1807 = vmatprep.subr.bf16.mxu0 0
        %1808 = vmatpush1.bf16.msra.mxu0 %v1801
        %1809 = vmatprep.subr.bf16.mxu0 0
        %1810 = vmatpush1.bf16.msra.mxu0 0
        %1811 = vmatprep.subr.bf16.mxu0 0
        %1812 = vmatpush1.bf16.msra.mxu0 0
        %1813 = vmatprep.subr.bf16.mxu0 0
        %1814 = vmatpush1.bf16.msra.mxu0 0
        %1815 = vmatprep.subr.bf16.mxu0 0
        %1816 = vmatpush1.bf16.msra.mxu0 0
        %1817 = vmatprep.subr.bf16.mxu0 0
        %1818 = vmatpush1.bf16.msra.mxu0 0
        %1819 = vmatprep.subr.bf16.mxu0 0
        %1820 = vmatpush1.bf16.msra.mxu0 0
        %1821 = vmatprep.subr.bf16.mxu0 0
        %1822 = vmatpush1.bf16.msra.mxu0 0
        %1823 = vmatprep.subr.bf16.mxu0 0
        %1824 = vmatpush1.bf16.msra.mxu0 0
        %1825 = vmatprep.subr.bf16.mxu0 0
        %1826 = vmatpush1.bf16.msra.mxu0 0
        %1827 = vmatprep.subr.bf16.mxu0 0
        %1828 = vmatpush1.bf16.msra.mxu0 0
        %1829 = vmatprep.subr.bf16.mxu0 0
        %1830 = vmatpush1.bf16.msra.mxu0 0
        %1831 = vmatprep.subr.bf16.mxu0 0
        %1832 = vmatpush1.bf16.msra.mxu0 0
        %1833 = vmatprep.subr.bf16.mxu0 0
        %1834 = vmatpush1.bf16.msra.mxu0 0
        %1835 = vmatprep.mubr.bf16.mxu0 0
        %1836 = vmatmul.mubr.bf16.gmra.mrb[0].mxu0 %v1752
        %v1837 = vpop.f32.mrb[0].mxu0
        %v1838 = vadd.f32 0.0, %v1837
        %v1839 = vpop.f32.mrb[0].mxu0
        %v1840 = vpop.f32.mrb[0].mxu0
        %v1841 = vadd.f32 0.0, %v1840
        %v1842 = vpop.f32.mrb[0].mxu0
        %1843 = vmatprep.mubr.bf16.mxu0 0
        %1844 = vmatmul.mubr.bf16.gmra.mrb[0].mxu0 %v1755
        %v1845 = vpop.f32.mrb[0].mxu0
        %v1846 = vadd.f32 0.0, %v1845
        %v1847 = vpop.f32.mrb[0].mxu0
        %v1848 = vpop.f32.mrb[0].mxu0
        %v1849 = vadd.f32 0.0, %v1848
        %v1850 = vpop.f32.mrb[0].mxu0
        %1851 = vmatprep.mubr.bf16.mxu0 0
        %1852 = vmatmul.mubr.bf16.gmra.mrb[0].mxu0 %v1758
        %v1853 = vpop.f32.mrb[0].mxu0
        %v1854 = vadd.f32 0.0, %v1853
        %v1855 = vpop.f32.mrb[0].mxu0
        %v1856 = vpop.f32.mrb[0].mxu0
        %v1857 = vadd.f32 0.0, %v1856
        %v1858 = vpop.f32.mrb[0].mxu0
        %1859 = vmatprep.mubr.bf16.mxu0 0
        %1860 = vmatmul.mubr.bf16.gmra.mrb[0].mxu0 %v1761
        %v1861 = vpop.f32.mrb[0].mxu0
        %v1862 = vadd.f32 0.0, %v1861
        %v1863 = vpop.f32.mrb[0].mxu0
        %v1864 = vpop.f32.mrb[0].mxu0
        %v1865 = vadd.f32 0.0, %v1864
        %v1866 = vpop.f32.mrb[0].mxu0
        %1867 = vmatprep.mubr.bf16.mxu0 0
        %1868 = vmatmul.mubr.bf16.gmra.mrb[0].mxu0 %v1764
        %v1869 = vpop.f32.mrb[0].mxu0
        %v1870 = vadd.f32 0.0, %v1869
        %v1871 = vpop.f32.mrb[0].mxu0
        %v1872 = vpop.f32.mrb[0].mxu0
        %v1873 = vadd.f32 0.0, %v1872
        %v1874 = vpop.f32.mrb[0].mxu0
        %1875 = vmatprep.mubr.bf16.mxu0 0
        %1876 = vmatmul.mubr.bf16.gmra.mrb[0].mxu0 %v1767
        %v1877 = vpop.f32.mrb[0].mxu0
        %v1878 = vadd.f32 0.0, %v1877
        %v1879 = vpop.f32.mrb[0].mxu0
        %v1880 = vpop.f32.mrb[0].mxu0
        %v1881 = vadd.f32 0.0, %v1880
        %v1882 = vpop.f32.mrb[0].mxu0
        %1883 = vmatprep.mubr.bf16.mxu0 0
        %1884 = vmatmul.mubr.bf16.gmra.mrb[0].mxu0 %v1770
        %v1885 = vpop.f32.mrb[0].mxu0
        %v1886 = vadd.f32 0.0, %v1885
        %v1887 = vpop.f32.mrb[0].mxu0
        %v1888 = vpop.f32.mrb[0].mxu0
        %v1889 = vadd.f32 0.0, %v1888
        %v1890 = vpop.f32.mrb[0].mxu0
        %1891 = vmatprep.mubr.bf16.mxu0 0
        %1892 = vmatmul.mubr.bf16.gmra.mrb[0].mxu0 %v1773
        %v1893 = vpop.f32.mrb[0].mxu0
        %v1894 = vadd.f32 0.0, %v1893
        %v1895 = vpop.f32.mrb[0].mxu0
        %v1896 = vpop.f32.mrb[0].mxu0
        %v1897 = vadd.f32 0.0, %v1896
        %v1898 = vpop.f32.mrb[0].mxu0
        %1899 = vmatprep.mubr.bf16.mxu0 0
        %1900 = vmatmul.mubr.bf16.gmra.mrb[0].mxu0 %v1776
        %v1901 = vpop.f32.mrb[0].mxu0
        %v1902 = vadd.f32 0.0, %v1901
        %v1903 = vpop.f32.mrb[0].mxu0
        %v1904 = vpop.f32.mrb[0].mxu0
        %v1905 = vadd.f32 0.0, %v1904
        %v1906 = vpop.f32.mrb[0].mxu0
        %1907 = vmatprep.mubr.bf16.mxu0 0
        %1908 = vmatmul.mubr.bf16.gmra.mrb[0].mxu0 %v1779
        %v1909 = vpop.f32.mrb[0].mxu0
        %v1910 = vadd.f32 0.0, %v1909
        %v1911 = vpop.f32.mrb[0].mxu0
        %v1912 = vpop.f32.mrb[0].mxu0
        %v1913 = vadd.f32 0.0, %v1912
        %v1914 = vpop.f32.mrb[0].mxu0
        %1915 = vmatprep.mubr.bf16.mxu0 0
        %1916 = vmatmul.mubr.bf16.gmra.mrb[0].mxu0 %v1782
        %v1917 = vpop.f32.mrb[0].mxu0
        %v1918 = vadd.f32 0.0, %v1917
        %v1919 = vpop.f32.mrb[0].mxu0
        %v1920 = vpop.f32.mrb[0].mxu0
        %v1921 = vadd.f32 0.0, %v1920
        %v1922 = vpop.f32.mrb[0].mxu0
        %1923 = vmatprep.mubr.bf16.mxu0 0
        %1924 = vmatmul.mubr.bf16.gmra.mrb[0].mxu0 %v1785
        %v1925 = vpop.f32.mrb[0].mxu0
        %v1926 = vadd.f32 0.0, %v1925
        %v1927 = vpop.f32.mrb[0].mxu0
        %v1928 = vpop.f32.mrb[0].mxu0
        %v1929 = vadd.f32 0.0, %v1928
        %v1930 = vpop.f32.mrb[0].mxu0
        %1931 = vmatprep.mubr.bf16.mxu0 0
        %1932 = vmatmul.mubr.bf16.gmra.mrb[0].mxu0 %v1788
        %v1933 = vpop.f32.mrb[0].mxu0
        %v1934 = vadd.f32 0.0, %v1933
        %v1935 = vpop.f32.mrb[0].mxu0
        %v1936 = vpop.f32.mrb[0].mxu0
        %v1937 = vadd.f32 0.0, %v1936
        %v1938 = vpop.f32.mrb[0].mxu0
        %1939 = vmatprep.mubr.bf16.mxu0 0
        %1940 = vmatmul.mubr.bf16.gmra.mrb[0].mxu0 %v1791
        %v1941 = vpop.f32.mrb[0].mxu0
        %v1942 = vadd.f32 0.0, %v1941
        %v1943 = vpop.f32.mrb[0].mxu0
        %v1944 = vpop.f32.mrb[0].mxu0
        %v1945 = vadd.f32 0.0, %v1944
        %v1946 = vpop.f32.mrb[0].mxu0
        %1947 = vmatprep.mubr.bf16.mxu0 0
        %1948 = vmatmul.mubr.bf16.gmra.mrb[0].mxu0 %v1794
        %v1949 = vpop.f32.mrb[0].mxu0
        %v1950 = vadd.f32 0.0, %v1949
        %v1951 = vpop.f32.mrb[0].mxu0
        %v1952 = vpop.f32.mrb[0].mxu0
        %v1953 = vadd.f32 0.0, %v1952
        %v1954 = vpop.f32.mrb[0].mxu0
        %1955 = vmatprep.mubr.bf16.mxu0 0
        %1956 = vmatmul.mubr.bf16.gmra.mrb[0].mxu0 %v1797
        %v1957 = vpop.f32.mrb[0].mxu0
        %v1958 = vadd.f32 0.0, %v1957
        %v1959 = vpop.f32.mrb[0].mxu0
        %v1960 = vpop.f32.mrb[0].mxu0
        %v1961 = vadd.f32 0.0, %v1960
        %v1962 = vpop.f32.mrb[0].mxu0
        %1963 = vdwg.mxu0
        %v1964 = vadd.f32 %v1682, %v1838
        %v1965 = vadd.f32 %v1683, %v1841
        %v1966 = vadd.f32 %v1684, %v1846
        %v1967 = vadd.f32 %v1685, %v1849
        %v1968 = vadd.f32 %v1686, %v1854
        %v1969 = vadd.f32 %v1687, %v1857
        %v1970 = vadd.f32 %v1688, %v1862
        %v1971 = vadd.f32 %v1689, %v1865
        %v1972 = vadd.f32 %v1690, %v1870
        %v1973 = vadd.f32 %v1691, %v1873
        %v1974 = vadd.f32 %v1692, %v1878
        %v1975 = vadd.f32 %v1693, %v1881
        %v1976 = vadd.f32 %v1694, %v1886
        %v1977 = vadd.f32 %v1695, %v1889
        %v1978 = vadd.f32 %v1696, %v1894
        %v1979 = vadd.f32 %v1697, %v1897
        %v1980 = vadd.f32 %v1698, %v1902
        %v1981 = vadd.f32 %v1699, %v1905
        %v1982 = vadd.f32 %v1700, %v1910
        %v1983 = vadd.f32 %v1701, %v1913
        %v1984 = vadd.f32 %v1702, %v1918
        %v1985 = vadd.f32 %v1703, %v1921
        %v1986 = vadd.f32 %v1704, %v1926
        %v1987 = vadd.f32 %v1705, %v1929
        %v1988 = vadd.f32 %v1706, %v1934
        %v1989 = vadd.f32 %v1707, %v1937
        %v1990 = vadd.f32 %v1708, %v1942
        %v1991 = vadd.f32 %v1709, %v1945
        %v1992 = vadd.f32 %v1710, %v1950
        %v1993 = vadd.f32 %v1711, %v1953
        %v1994 = vadd.f32 %v1712, %v1958
        %v1995 = vadd.f32 %v1713, %v1961
        %1996 = vst [vmem:[#allocation2] sm:$0xff] %v1964
        %1997 = vst [vmem:[#allocation2 + $0x8] sm:$0xff] %v1965
        %1998 = vst [vmem:[#allocation2 + $0x10] sm:$0xff] %v1966
        %1999 = vst [vmem:[#allocation2 + $0x18] sm:$0xff] %v1967
        %2000 = vst [vmem:[#allocation2 + $0x20] sm:$0xff] %v1968
        %2001 = vst [vmem:[#allocation2 + $0x28] sm:$0xff] %v1969
        %2002 = vst [vmem:[#allocation2 + $0x30] sm:$0xff] %v1970
        %2003 = vst [vmem:[#allocation2 + $0x38] sm:$0xff] %v1971
        %2004 = vst [vmem:[#allocation2 + $0x40] sm:$0xff] %v1972
        %2005 = vst [vmem:[#allocation2 + $0x48] sm:$0xff] %v1973
        %2006 = vst [vmem:[#allocation2 + $0x50] sm:$0xff] %v1974
        %2007 = vst [vmem:[#allocation2 + $0x58] sm:$0xff] %v1975
        %2008 = vst [vmem:[#allocation2 + $0x60] sm:$0xff] %v1976
        %2009 = vst [vmem:[#allocation2 + $0x68] sm:$0xff] %v1977
        %2010 = vst [vmem:[#allocation2 + $0x70] sm:$0xff] %v1978
        %2011 = vst [vmem:[#allocation2 + $0x78] sm:$0xff] %v1979
        %2012 = vst [vmem:[#allocation2 + $0x80] sm:$0xff] %v1980
        %2013 = vst [vmem:[#allocation2 + $0x88] sm:$0xff] %v1981
        %2014 = vst [vmem:[#allocation2 + $0x90] sm:$0xff] %v1982
        %2015 = vst [vmem:[#allocation2 + $0x98] sm:$0xff] %v1983
        %2016 = vst [vmem:[#allocation2 + $0xa0] sm:$0xff] %v1984
        %2017 = vst [vmem:[#allocation2 + $0xa8] sm:$0xff] %v1985
        %2018 = vst [vmem:[#allocation2 + $0xb0] sm:$0xff] %v1986
        %2019 = vst [vmem:[#allocation2 + $0xb8] sm:$0xff] %v1987
        %2020 = vst [vmem:[#allocation2 + $0xc0] sm:$0xff] %v1988
        %2021 = vst [vmem:[#allocation2 + $0xc8] sm:$0xff] %v1989
        %2022 = vst [vmem:[#allocation2 + $0xd0] sm:$0xff] %v1990
        %2023 = vst [vmem:[#allocation2 + $0xd8] sm:$0xff] %v1991
        %2024 = vst [vmem:[#allocation2 + $0xe0] sm:$0xff] %v1992
        %2025 = vst [vmem:[#allocation2 + $0xe8] sm:$0xff] %v1993
        %2026 = vst [vmem:[#allocation2 + $0xf0] sm:$0xff] %v1994
        %2027 = vst [vmem:[#allocation2 + $0xf8] sm:$0xff] %v1995
        %p2028 = scmp.eq.s32.totalorder %s25, 2
        // Predicated region
        $region41: #{tpu_custom_call.1} parent=35 // pred_check
          %p2029 = pneg %p2028
        $region42: #{tpu_custom_call.1} parent=35 // pred_check_branch
          %2031 = sbr.rel (%p2029) target = $region44
        $region43: #{tpu_custom_call.1} parent=35 // pred_region
          %v2032 = vld [vmem:[#allocation2] sm:$0xff]
          %v2033 = vld [vmem:[#allocation2 + $0x8] sm:$0xff]
          %v2034 = vld [vmem:[#allocation2 + $0x10] sm:$0xff]
          %v2035 = vld [vmem:[#allocation2 + $0x18] sm:$0xff]
          %v2036 = vld [vmem:[#allocation2 + $0x20] sm:$0xff]
          %v2037 = vld [vmem:[#allocation2 + $0x28] sm:$0xff]
          %v2038 = vld [vmem:[#allocation2 + $0x30] sm:$0xff]
          %v2039 = vld [vmem:[#allocation2 + $0x38] sm:$0xff]
          %v2040 = vld [vmem:[#allocation2 + $0x40] sm:$0xff]
          %v2041 = vld [vmem:[#allocation2 + $0x48] sm:$0xff]
          %v2042 = vld [vmem:[#allocation2 + $0x50] sm:$0xff]
          %v2043 = vld [vmem:[#allocation2 + $0x58] sm:$0xff]
          %v2044 = vld [vmem:[#allocation2 + $0x60] sm:$0xff]
          %v2045 = vld [vmem:[#allocation2 + $0x68] sm:$0xff]
          %v2046 = vld [vmem:[#allocation2 + $0x70] sm:$0xff]
          %v2047 = vld [vmem:[#allocation2 + $0x78] sm:$0xff]
          %v2048 = vld [vmem:[#allocation2 + $0x80] sm:$0xff]
          %v2049 = vld [vmem:[#allocation2 + $0x88] sm:$0xff]
          %v2050 = vld [vmem:[#allocation2 + $0x90] sm:$0xff]
          %v2051 = vld [vmem:[#allocation2 + $0x98] sm:$0xff]
          %v2052 = vld [vmem:[#allocation2 + $0xa0] sm:$0xff]
          %v2053 = vld [vmem:[#allocation2 + $0xa8] sm:$0xff]
          %v2054 = vld [vmem:[#allocation2 + $0xb0] sm:$0xff]
          %v2055 = vld [vmem:[#allocation2 + $0xb8] sm:$0xff]
          %v2056 = vld [vmem:[#allocation2 + $0xc0] sm:$0xff]
          %v2057 = vld [vmem:[#allocation2 + $0xc8] sm:$0xff]
          %v2058 = vld [vmem:[#allocation2 + $0xd0] sm:$0xff]
          %v2059 = vld [vmem:[#allocation2 + $0xd8] sm:$0xff]
          %v2060 = vld [vmem:[#allocation2 + $0xe0] sm:$0xff]
          %v2061 = vld [vmem:[#allocation2 + $0xe8] sm:$0xff]
          %v2062 = vld [vmem:[#allocation2 + $0xf0] sm:$0xff]
          %v2063 = vld [vmem:[#allocation2 + $0xf8] sm:$0xff]
          %v2064 = vld [vmem:[%s2] sm:$0x1]
          %v2066 = vlaneseq
          %v2067 = vshrl.u32 %v2066, 7
          %v2068 = vsub.s32 0, %v2067
          %v2069 = vrot.slane %v2064, %v2068
          %v2071 = vmul.f32 %v2032, %v2069
          %v2072 = vmul.f32 %v2033, %v2069
          %v2073 = vmul.f32 %v2034, %v2069
          %v2074 = vmul.f32 %v2035, %v2069
          %v2075 = vmul.f32 %v2036, %v2069
          %v2076 = vmul.f32 %v2037, %v2069
          %v2077 = vmul.f32 %v2038, %v2069
          %v2078 = vmul.f32 %v2039, %v2069
          %v2079 = vmul.f32 %v2040, %v2069
          %v2080 = vmul.f32 %v2041, %v2069
          %v2081 = vmul.f32 %v2042, %v2069
          %v2082 = vmul.f32 %v2043, %v2069
          %v2083 = vmul.f32 %v2044, %v2069
          %v2084 = vmul.f32 %v2045, %v2069
          %v2085 = vmul.f32 %v2046, %v2069
          %v2086 = vmul.f32 %v2047, %v2069
          %v2087 = vmul.f32 %v2048, %v2069
          %v2088 = vmul.f32 %v2049, %v2069
          %v2089 = vmul.f32 %v2050, %v2069
          %v2090 = vmul.f32 %v2051, %v2069
          %v2091 = vmul.f32 %v2052, %v2069
          %v2092 = vmul.f32 %v2053, %v2069
          %v2093 = vmul.f32 %v2054, %v2069
          %v2094 = vmul.f32 %v2055, %v2069
          %v2095 = vmul.f32 %v2056, %v2069
          %v2096 = vmul.f32 %v2057, %v2069
          %v2097 = vmul.f32 %v2058, %v2069
          %v2098 = vmul.f32 %v2059, %v2069
          %v2099 = vmul.f32 %v2060, %v2069
          %v2100 = vmul.f32 %v2061, %v2069
          %v2101 = vmul.f32 %v2062, %v2069
          %v2102 = vmul.f32 %v2063, %v2069
          %v2103 = vld [vmem:[%s3] sm:$0x1]
          %v2105 = vlaneseq
          %v2106 = vshrl.u32 %v2105, 7
          %v2107 = vsub.s32 0, %v2106
          %v2108 = vrot.slane %v2103, %v2107
          %v2110 = vadd.f32 %v2071, %v2108
          %v2111 = vadd.f32 %v2072, %v2108
          %v2112 = vadd.f32 %v2073, %v2108
          %v2113 = vadd.f32 %v2074, %v2108
          %v2114 = vadd.f32 %v2075, %v2108
          %v2115 = vadd.f32 %v2076, %v2108
          %v2116 = vadd.f32 %v2077, %v2108
          %v2117 = vadd.f32 %v2078, %v2108
          %v2118 = vadd.f32 %v2079, %v2108
          %v2119 = vadd.f32 %v2080, %v2108
          %v2120 = vadd.f32 %v2081, %v2108
          %v2121 = vadd.f32 %v2082, %v2108
          %v2122 = vadd.f32 %v2083, %v2108
          %v2123 = vadd.f32 %v2084, %v2108
          %v2124 = vadd.f32 %v2085, %v2108
          %v2125 = vadd.f32 %v2086, %v2108
          %v2126 = vadd.f32 %v2087, %v2108
          %v2127 = vadd.f32 %v2088, %v2108
          %v2128 = vadd.f32 %v2089, %v2108
          %v2129 = vadd.f32 %v2090, %v2108
          %v2130 = vadd.f32 %v2091, %v2108
          %v2131 = vadd.f32 %v2092, %v2108
          %v2132 = vadd.f32 %v2093, %v2108
          %v2133 = vadd.f32 %v2094, %v2108
          %v2134 = vadd.f32 %v2095, %v2108
          %v2135 = vadd.f32 %v2096, %v2108
          %v2136 = vadd.f32 %v2097, %v2108
          %v2137 = vadd.f32 %v2098, %v2108
          %v2138 = vadd.f32 %v2099, %v2108
          %v2139 = vadd.f32 %v2100, %v2108
          %v2140 = vadd.f32 %v2101, %v2108
          %v2141 = vadd.f32 %v2102, %v2108
          %vm2142 = vcmp.ge.f32.partialorder %v2110, 0.0
          %vm2143 = vcmp.ge.f32.partialorder %v2111, 0.0
          %vm2144 = vcmp.ge.f32.partialorder %v2112, 0.0
          %vm2145 = vcmp.ge.f32.partialorder %v2113, 0.0
          %vm2146 = vcmp.ge.f32.partialorder %v2114, 0.0
          %vm2147 = vcmp.ge.f32.partialorder %v2115, 0.0
          %vm2148 = vcmp.ge.f32.partialorder %v2116, 0.0
          %vm2149 = vcmp.ge.f32.partialorder %v2117, 0.0
          %vm2150 = vcmp.ge.f32.partialorder %v2118, 0.0
          %vm2151 = vcmp.ge.f32.partialorder %v2119, 0.0
          %vm2152 = vcmp.ge.f32.partialorder %v2120, 0.0
          %vm2153 = vcmp.ge.f32.partialorder %v2121, 0.0
          %vm2154 = vcmp.ge.f32.partialorder %v2122, 0.0
          %vm2155 = vcmp.ge.f32.partialorder %v2123, 0.0
          %vm2156 = vcmp.ge.f32.partialorder %v2124, 0.0
          %vm2157 = vcmp.ge.f32.partialorder %v2125, 0.0
          %vm2158 = vcmp.ge.f32.partialorder %v2126, 0.0
          %vm2159 = vcmp.ge.f32.partialorder %v2127, 0.0
          %vm2160 = vcmp.ge.f32.partialorder %v2128, 0.0
          %vm2161 = vcmp.ge.f32.partialorder %v2129, 0.0
          %vm2162 = vcmp.ge.f32.partialorder %v2130, 0.0
          %vm2163 = vcmp.ge.f32.partialorder %v2131, 0.0
          %vm2164 = vcmp.ge.f32.partialorder %v2132, 0.0
          %vm2165 = vcmp.ge.f32.partialorder %v2133, 0.0
          %vm2166 = vcmp.ge.f32.partialorder %v2134, 0.0
          %vm2167 = vcmp.ge.f32.partialorder %v2135, 0.0
          %vm2168 = vcmp.ge.f32.partialorder %v2136, 0.0
          %vm2169 = vcmp.ge.f32.partialorder %v2137, 0.0
          %vm2170 = vcmp.ge.f32.partialorder %v2138, 0.0
          %vm2171 = vcmp.ge.f32.partialorder %v2139, 0.0
          %vm2172 = vcmp.ge.f32.partialorder %v2140, 0.0
          %vm2173 = vcmp.ge.f32.partialorder %v2141, 0.0
          %v2174 = vmul.f32 %v2110, 0.01
          %v2175 = vmul.f32 %v2111, 0.01
          %v2176 = vmul.f32 %v2112, 0.01
          %v2177 = vmul.f32 %v2113, 0.01
          %v2178 = vmul.f32 %v2114, 0.01
          %v2179 = vmul.f32 %v2115, 0.01
          %v2180 = vmul.f32 %v2116, 0.01
          %v2181 = vmul.f32 %v2117, 0.01
          %v2182 = vmul.f32 %v2118, 0.01
          %v2183 = vmul.f32 %v2119, 0.01
          %v2184 = vmul.f32 %v2120, 0.01
          %v2185 = vmul.f32 %v2121, 0.01
          %v2186 = vmul.f32 %v2122, 0.01
          %v2187 = vmul.f32 %v2123, 0.01
          %v2188 = vmul.f32 %v2124, 0.01
          %v2189 = vmul.f32 %v2125, 0.01
          %v2190 = vmul.f32 %v2126, 0.01
          %v2191 = vmul.f32 %v2127, 0.01
          %v2192 = vmul.f32 %v2128, 0.01
          %v2193 = vmul.f32 %v2129, 0.01
          %v2194 = vmul.f32 %v2130, 0.01
          %v2195 = vmul.f32 %v2131, 0.01
          %v2196 = vmul.f32 %v2132, 0.01
          %v2197 = vmul.f32 %v2133, 0.01
          %v2198 = vmul.f32 %v2134, 0.01
          %v2199 = vmul.f32 %v2135, 0.01
          %v2200 = vmul.f32 %v2136, 0.01
          %v2201 = vmul.f32 %v2137, 0.01
          %v2202 = vmul.f32 %v2138, 0.01
          %v2203 = vmul.f32 %v2139, 0.01
          %v2204 = vmul.f32 %v2140, 0.01
          %v2205 = vmul.f32 %v2141, 0.01
          %v2206 = vsel %vm2142, %v2110, %v2174
          %v2207 = vsel %vm2143, %v2111, %v2175
          %v2208 = vsel %vm2144, %v2112, %v2176
          %v2209 = vsel %vm2145, %v2113, %v2177
          %v2210 = vsel %vm2146, %v2114, %v2178
          %v2211 = vsel %vm2147, %v2115, %v2179
          %v2212 = vsel %vm2148, %v2116, %v2180
          %v2213 = vsel %vm2149, %v2117, %v2181
          %v2214 = vsel %vm2150, %v2118, %v2182
          %v2215 = vsel %vm2151, %v2119, %v2183
          %v2216 = vsel %vm2152, %v2120, %v2184
          %v2217 = vsel %vm2153, %v2121, %v2185
          %v2218 = vsel %vm2154, %v2122, %v2186
          %v2219 = vsel %vm2155, %v2123, %v2187
          %v2220 = vsel %vm2156, %v2124, %v2188
          %v2221 = vsel %vm2157, %v2125, %v2189
          %v2222 = vsel %vm2158, %v2126, %v2190
          %v2223 = vsel %vm2159, %v2127, %v2191
          %v2224 = vsel %vm2160, %v2128, %v2192
          %v2225 = vsel %vm2161, %v2129, %v2193
          %v2226 = vsel %vm2162, %v2130, %v2194
          %v2227 = vsel %vm2163, %v2131, %v2195
          %v2228 = vsel %vm2164, %v2132, %v2196
          %v2229 = vsel %vm2165, %v2133, %v2197
          %v2230 = vsel %vm2166, %v2134, %v2198
          %v2231 = vsel %vm2167, %v2135, %v2199
          %v2232 = vsel %vm2168, %v2136, %v2200
          %v2233 = vsel %vm2169, %v2137, %v2201
          %v2234 = vsel %vm2170, %v2138, %v2202
          %v2235 = vsel %vm2171, %v2139, %v2203
          %v2236 = vsel %vm2172, %v2140, %v2204
          %v2237 = vsel %vm2173, %v2141, %v2205
          %2238 = vst [vmem:[%s241] sm:$0xff] %v2206
          %2239 = vst [vmem:[%s241 + $0x8] sm:$0xff] %v2207
          %2240 = vst [vmem:[%s241 + $0x10] sm:$0xff] %v2208
          %2241 = vst [vmem:[%s241 + $0x18] sm:$0xff] %v2209
          %2242 = vst [vmem:[%s241 + $0x20] sm:$0xff] %v2210
          %2243 = vst [vmem:[%s241 + $0x28] sm:$0xff] %v2211
          %2244 = vst [vmem:[%s241 + $0x30] sm:$0xff] %v2212
          %2245 = vst [vmem:[%s241 + $0x38] sm:$0xff] %v2213
          %2246 = vst [vmem:[%s241 + $0x40] sm:$0xff] %v2214
          %2247 = vst [vmem:[%s241 + $0x48] sm:$0xff] %v2215
          %2248 = vst [vmem:[%s241 + $0x50] sm:$0xff] %v2216
          %2249 = vst [vmem:[%s241 + $0x58] sm:$0xff] %v2217
          %2250 = vst [vmem:[%s241 + $0x60] sm:$0xff] %v2218
          %2251 = vst [vmem:[%s241 + $0x68] sm:$0xff] %v2219
          %2252 = vst [vmem:[%s241 + $0x70] sm:$0xff] %v2220
          %2253 = vst [vmem:[%s241 + $0x78] sm:$0xff] %v2221
          %2254 = vst [vmem:[%s241 + $0x80] sm:$0xff] %v2222
          %2255 = vst [vmem:[%s241 + $0x88] sm:$0xff] %v2223
          %2256 = vst [vmem:[%s241 + $0x90] sm:$0xff] %v2224
          %2257 = vst [vmem:[%s241 + $0x98] sm:$0xff] %v2225
          %2258 = vst [vmem:[%s241 + $0xa0] sm:$0xff] %v2226
          %2259 = vst [vmem:[%s241 + $0xa8] sm:$0xff] %v2227
          %2260 = vst [vmem:[%s241 + $0xb0] sm:$0xff] %v2228
          %2261 = vst [vmem:[%s241 + $0xb8] sm:$0xff] %v2229
          %2262 = vst [vmem:[%s241 + $0xc0] sm:$0xff] %v2230
          %2263 = vst [vmem:[%s241 + $0xc8] sm:$0xff] %v2231
          %2264 = vst [vmem:[%s241 + $0xd0] sm:$0xff] %v2232
          %2265 = vst [vmem:[%s241 + $0xd8] sm:$0xff] %v2233
          %2266 = vst [vmem:[%s241 + $0xe0] sm:$0xff] %v2234
          %2267 = vst [vmem:[%s241 + $0xe8] sm:$0xff] %v2235
          %2268 = vst [vmem:[%s241 + $0xf0] sm:$0xff] %v2236
          %2269 = vst [vmem:[%s241 + $0xf8] sm:$0xff] %v2237
        $region44: #{tpu_custom_call.1} parent=35 // pred_fallthru
          _
        %s2270 = sand.u32 %s145, 1
        %s2271 = scalar_lea.sflag [#allocation5], %s2270
        %s2272 = sand.u32 %s145, 1
        %s2273 = smul.addr %s2272, 256
        %s2274 = scalar_lea.vmem [#allocation4], %s2273
        // Predicated region
        $region45: #{tpu_custom_call.1} parent=35 // pred_check
          %p2275 = pneg %p155
        $region46: #{tpu_custom_call.1} parent=35 // pred_check_branch
          %2277 = sbr.rel (%p2275) target = $region48
        $region47: #{tpu_custom_call.1} parent=35 // pred_region
          %s2279 = ssub.s32 4096, 4096
          %2280 = vsyncadd %s2271, %s2279
          %s2281 = smul.addr %s24, 32
          %s2282 = smul.addr %s23, 256
          %s2283 = sadd.s32 %s2281, %s2282
          %s2284 = smul.addr %s2283, 128
          %s2285 = scalar_lea.hbm %s4, %s2284
          %s2286 = sshll.u32 %s2274, 4
          %s2287 = int_to_ptr.vmem [resolvable:$true] %s2286
          %2292 = dma.vmem_to_hbm [thread:$0]  %s2287, 4096, %s2285, %s2271, 128, 128, 8
        $region48: #{tpu_custom_call.1} parent=35 // pred_fallthru
          _
      $region36: #{tpu_custom_call.1} parent=5 // pred_fallthru
        _
      %p2293 = scmp.le.s32.totalorder 2, %s13
      // Predicated region
      $region49: #{tpu_custom_call.1} parent=5 // pred_check
        %p2294 = pneg %p2293
      $region50: #{tpu_custom_call.1} parent=5 // pred_check_branch
        %2296 = sbr.rel (%p2294) target = $region52
      $region51: #{tpu_custom_call.1} parent=5 // pred_region
        %s2297 = ssub.s32 %s13, 2
        // Predicated region
        $region53: #{tpu_custom_call.1} parent=51 // pred_check
          %p2298 = pneg %p161
        $region54: #{tpu_custom_call.1} parent=51 // pred_check_branch
          %2300 = sbr.rel (%p2298) target = $region56
        $region55: #{tpu_custom_call.1} parent=51 // pred_region
          %s2301 = sand.u32 %s146, 1
          %s2302 = scalar_lea.sflag [#allocation5], %s2301
          %s2303 = sand.u32 %s146, 1
          %s2304 = smul.addr %s2303, 256
          %s2305 = scalar_lea.vmem [#allocation4], %s2304
          %2306 = dma.done %s2302, 4096
        $region56: #{tpu_custom_call.1} parent=51 // pred_fallthru
          _
      $region52: #{tpu_custom_call.1} parent=5 // pred_fallthru
        _
    $region6: #{tpu_custom_call.1} parent=1 // loop_footer
      %s17 = sadd.s32 1, %s13
    $region7: #{tpu_custom_call.1} parent=1 // loop_footer_branch
      %12 = sbr.rel target = $region3
    $region8: #{tpu_custom_call.1} parent=1 // loop_exit
      _
    %2307 = vsyncpa [#allocation5], 1
    %s2308 = scalar_lea.sflag [#allocation5], 1
    %2309 = vsyncpa %s2308, 1

</llo_original>
